<compile_context>
chip_gen: v7x
topology: tpu7x:2x2x1
jax: 0.10.0
libtpu: 0.0.40
codegen_flags: <defaults>
</compile_context>

<pallas_src>
import functools

import jax
import jax.numpy as jnp
import numpy as np
from jax.experimental import pallas as pl
from jax.experimental.pallas import tpu as pltpu


# ----------------------------------------------------------------------------
# Activation
# ----------------------------------------------------------------------------
def act(x):
    # TODO(synk): utils.get_activation_function(args) is not provided; using
    # LeakyReLU(0.01) (PyTorch default slope) as a deterministic stand-in.
    return jax.nn.leaky_relu(x, negative_slope=0.01)


# ----------------------------------------------------------------------------
# Fused Pallas kernel (one grid step = one batch tile)
# ----------------------------------------------------------------------------
def _fused_kernel(x_ref, fc_ref, pre_ref,
                  wc1_ref, bc1_ref, wfc_ref, bfc_ref, wc2_ref, bc2_ref,
                  out_ref, quad_ref,
                  e_ref, slab1_ref, slab2_ref,
                  *, H, W, ch, cin1, cin2, k0, p0, k1, p1, pad, bB):
    HW = H * W
    SEG = HW + 2 * pad          # per-batch segment in the staging buffer

    # --- zero ONLY the halo/pad bands; the interior is fully overwritten -----
    zero_band = jnp.zeros((cin2, pad), jnp.float32)
    for b in range(bB):
        e_ref[:, pl.ds(b * SEG, pad)] = zero_band
        e_ref[:, pl.ds(b * SEG + pad + HW, pad)] = zero_band

    # --- stage the interpolated 4D inputs ------------------------------------
    # (x is only ~cin1*HW*4B per element; the VMEM->VMEM copy is negligible, so
    #  we keep the simple auto-pipelined BlockSpec rather than a manual DMA.)
    for b in range(bB):
        e_ref[pl.ds(0, cin1), pl.ds(b * SEG + pad, HW)] = x_ref[b]

    # Horizontal-edge masks: built & pre-broadcast once per conv (hoisted).
    xx = jax.lax.broadcasted_iota(jnp.int32, (1, HW), 1) % W

    def make_masks(k, p, cin):
        masks = {}
        for ox in range(-p, k - p):
            if ox == 0:
                continue
            xi = xx + ox
            m = ((xi >= 0) & (xi < W)).astype(jnp.float32)
            masks[ox] = jnp.broadcast_to(m, (cin, HW))
        return masks

    def build_slab(slab_ref, cin, k, p):
        # In-kernel im2col -> [k*k*cin, bB*HW] slab.  One row-shifted load per
        # (dy, batch); dx shifts via pltpu.roll on resident data; horizontal
        # zero padding baked in through the masks; vertical zero padding comes
        # from the zeroed halo bands of e_ref.
        masks = make_masks(k, p, cin)
        for dy in range(k):
            oy = dy - p
            for b in range(bB):
                row = e_ref[pl.ds(0, cin), pl.ds(b * SEG + pad + oy * W, HW)]
                for dx in range(k):
                    ox = dx - p
                    t = dy * k + dx
                    if ox == 0:
                        win = row
                    else:
                        win = pltpu.roll(row, shift=(-ox) % HW, axis=1) * masks[ox]
                    slab_ref[pl.ds(t * cin, cin), pl.ds(b * HW, HW)] = win

    # --- base_conv: ONE MXU dot over the fused slab (bias, no activation) ----
    build_slab(slab1_ref, cin1, k0, p0)
    base = jnp.dot(wc1_ref[...], slab1_ref[...],
                   preferred_element_type=jnp.float32) + bc1_ref[...]
    for b in range(bB):
        e_ref[pl.ds(cin1, ch), pl.ds(b * SEG + pad, HW)] = \
            base[:, b * HW:(b + 1) * HW]

    # --- base_fc_to_4dim: one [bB, nin] @ [nin, ch*HW] bf16 dot + act --------
    fc_act = act(jnp.dot(fc_ref[...], wfc_ref[...],
                         preferred_element_type=jnp.float32) + bfc_ref[...])
    for b in range(bB):
        # single relayout + single [ch, HW] block store (no per-channel scatter)
        e_ref[pl.ds(cin1 + ch, ch), pl.ds(b * SEG + pad, HW)] = \
            fc_act[b:b + 1, :].reshape(ch, HW)

    # --- energy_conv + end-layer activation ----------------------------------
    build_slab(slab2_ref, cin2, k1, p1)
    out = act(jnp.dot(wc2_ref[...], slab2_ref[...],
                      preferred_element_type=jnp.float32) + bc2_ref[...])

    for b in range(bB):
        ob = out[:, b * HW:(b + 1) * HW]
        out_ref[b] = ob.astype(out_ref.dtype)
        # quadr_out = 0.5 * <out, pre_states> for this batch element
        quad_ref[b, 0] = 0.5 * jnp.sum(ob * pre_ref[b])


def _pick_batch_tile(B):
    # Prefer >=4 grid steps (so each v7x TensorCore gets >=2 pipelined steps);
    # for small batches take everything in one step to amortize the per-step
    # overhead and keep the matmuls batched.
    for bb in (8, 4, 2):
        if B % bb == 0 and (B // bb) >= 4:
            return bb
    return B


def fused_forward(x_flat, fc_in, pre_flat, params, H, W, ch, k0, p0, k1, p1):
    B, cin1, HW = x_flat.shape
    nin = fc_in.shape[1]
    cin2 = cin1 + 2 * ch
    ttl = ch * HW
    bB = _pick_batch_tile(B)
    nb = B // bB

    # Zero halo wide enough for the largest tap offset, rounded to a multiple
    # of 128 so every per-batch interior start stays lane aligned.
    need = max(max(p0, k0 - 1 - p0), max(p1, k1 - 1 - p1)) * (W + 1)
    pad = 128 * pl.cdiv(max(need, 1), 128)
    seg = HW + 2 * pad

    kernel = functools.partial(
        _fused_kernel, H=H, W=W, ch=ch, cin1=cin1, cin2=cin2,
        k0=k0, p0=p0, k1=k1, p1=p1, pad=pad, bB=bB)

    out, quad = pl.pallas_call(
        kernel,
        out_shape=(jax.ShapeDtypeStruct((B, ch, HW), jnp.float32),
                   jax.ShapeDtypeStruct((B, 1), jnp.float32)),
        grid=(nb,),
        in_specs=[
            pl.BlockSpec((bB, cin1, HW), lambda b: (b, 0, 0)),        # x_flat
            pl.BlockSpec((bB, nin), lambda b: (b, 0)),                # fc_in (bf16)
            pl.BlockSpec((bB, ch, HW), lambda b: (b, 0, 0)),          # pre_flat
            pl.BlockSpec((ch, k0 * k0 * cin1), lambda b: (0, 0)),     # wc1 flat
            pl.BlockSpec((ch, 1), lambda b: (0, 0)),                  # bc1
            pl.BlockSpec((nin, ttl), lambda b: (0, 0)),               # wfc_t (bf16)
            pl.BlockSpec((1, ttl), lambda b: (0, 0)),                 # bfc
            pl.BlockSpec((ch, k1 * k1 * cin2), lambda b: (0, 0)),     # wc2 flat
            pl.BlockSpec((ch, 1), lambda b: (0, 0)),                  # bc2
        ],
        out_specs=(
            pl.BlockSpec((bB, ch, HW), lambda b: (b, 0, 0)),
            pl.BlockSpec((bB, 1), lambda b: (b, 0),
                         memory_space=pltpu.MemorySpace.SMEM),
        ),
        scratch_shapes=[
            pltpu.VMEM((cin2, bB * seg), jnp.float32),                # staging+halo
            pltpu.VMEM((k0 * k0 * cin1, bB * HW), jnp.float32),       # base slab
            pltpu.VMEM((k1 * k1 * cin2, bB * HW), jnp.float32),       # energy slab
        ],
        compiler_params=pltpu.CompilerParams(
            dimension_semantics=("parallel",),
            vmem_limit_bytes=32 * 1024 * 1024),
    )(x_flat, fc_in.astype(jnp.bfloat16), pre_flat,
      params["wc1_flat"], params["bc1"], params["wfc_t"], params["bfc"],
      params["wc2_flat"], params["bc2"])
    return out, quad


# ----------------------------------------------------------------------------
# Plain-JAX glue (layout / parameter setup)
# ----------------------------------------------------------------------------
def interpolate_nearest(x, size):
    # Matches torch.nn.functional.interpolate(mode='nearest'):
    #   src = floor(dst * in_size / out_size)
    _, _, h, w = x.shape
    H, W = size
    rows = jnp.floor(jnp.arange(H) * (h / H)).astype(jnp.int32)
    cols = jnp.floor(jnp.arange(W) * (w / W)).astype(jnp.int32)
    return x[:, :, rows][:, :, :, cols]


def conv_weight_flat(w):
    # [Cout, Cin, kh, kw] -> [Cout, kh*kw*Cin]; column = (dy*kw+dx)*Cin + ci,
    # matching the im2col slab row order built inside the kernel.
    cout, cin, kh, kw = w.shape
    return jnp.transpose(w, (0, 2, 3, 1)).reshape(cout, kh * kw * cin)


def spectral_normalize(w, u, bound):
    # One power iteration, same as SpectralNorm.compute_weight.
    w_mat = w.reshape(w.shape[0], -1)
    v = w_mat.T @ u
    v = v / jnp.linalg.norm(v)
    u2 = w_mat @ v
    u2 = u2 / jnp.linalg.norm(u2)
    sigma = u2 @ w_mat @ v
    if bound:
        return w / (sigma + 1e-6) * jnp.minimum(sigma, 1.0)
    return w / sigma


def forward(params, pre_states, inputs, state_hw, state_ch, k0, p0, k1, p1):
    H, W = state_hw
    inps_4d = [t for t in inputs if t.ndim == 4]
    inps_2d = [t for t in inputs if t.ndim == 2]
    # Same filter as the PyTorch code: only 4D inputs whose spatial dims differ
    # from the state layer's are interpolated and used.
    reshaped = [interpolate_nearest(t, (H, W)) for t in inps_4d
                if t.shape[2:] != (H, W)]
    x4d = jnp.concatenate(reshaped, axis=1)                 # [B, Cin_conv, H, W]
    B = x4d.shape[0]
    fc_in = jnp.concatenate(inps_2d, axis=1)                # [B, Nin_fc]

    x_flat = x4d.reshape(B, x4d.shape[1], H * W)
    pre_flat = pre_states.reshape(B, state_ch, H * W)

    out_flat, quad = fused_forward(x_flat, fc_in, pre_flat, params,
                                   H, W, state_ch, k0, p0, k1, p1)
    out = out_flat.reshape(B, state_ch, H, W)
    return quad[:, 0], out


# ----------------------------------------------------------------------------
# Pure-JAX reference (for correctness check)
# ----------------------------------------------------------------------------
def conv2d_ref(x, w, b, pad):
    y = jax.lax.conv_general_dilated(
        x, w, window_strides=(1, 1), padding=[(pad, pad), (pad, pad)],
        dimension_numbers=("NCHW", "OIHW", "NCHW"))
    return y + b[None, :, None, None]


def forward_ref(raw, pre_states, inputs, state_hw, state_ch, k0, p0, k1, p1):
    H, W = state_hw
    inps_4d = [t for t in inputs if t.ndim == 4]
    inps_2d = [t for t in inputs if t.ndim == 2]
    reshaped = [interpolate_nearest(t, (H, W)) for t in inps_4d
                if t.shape[2:] != (H, W)]
    x4d = jnp.concatenate(reshaped, axis=1)
    B = x4d.shape[0]
    base = conv2d_ref(x4d, raw["wc1_4d"], raw["bc1"], p0)
    fc_in = jnp.concatenate(inps_2d, axis=1)
    fc = act(fc_in @ raw["wfc"].T + raw["bfc"])
    fc4 = fc.reshape(B, state_ch, H, W)
    eng = jnp.concatenate([x4d, base, fc4], axis=1)
    out = act(conv2d_ref(eng, raw["wc2_4d"], raw["bc2"], p1))
    quad = 0.5 * jnp.sum(out.reshape(B, -1) * pre_states.reshape(B, -1), axis=1)
    return quad, out


# ----------------------------------------------------------------------------
if __name__ == "__main__":
    # --- architecture (small, consistent with the module) --------------------
    B = 2
    state_ch, H, W = 4, 16, 16                 # state_sizes[layer_idx] = [B,4,16,16]
    ttl = state_ch * H * W                     # 1024
    k0, p0 = 3, 1                              # kernel_sizes[layer_idx][0], padding[0], stride 1
    k1, p1 = 3, 1                              # kernel_sizes[layer_idx][1], padding[1]
    # inputs: two 4D state layers (spatial != (16,16)) and two 2D state layers
    in_conv_channels = 4 + 4                   # 8
    in_fc_neurons = 16 + 32                    # 48
    energy_in_ch = state_ch * 2 + in_conv_channels  # 16

    # --- deterministic parameters & inputs (spectral_norm init semantics) ----
    ks = jax.random.split(jax.random.PRNGKey(0), 12)
    w_base_conv = jax.random.normal(ks[0], (state_ch, in_conv_channels, k0, k0),
                                    jnp.float32)                  # N(0,1)
    u_base_conv = jax.random.normal(ks[1], (state_ch,), jnp.float32)
    w_fc = jax.random.normal(ks[2], (ttl, in_fc_neurons), jnp.float32)  # N(0,1)
    u_fc = jax.random.normal(ks[3], (ttl,), jnp.float32)
    w_energy = 1e-10 * jax.random.normal(ks[4], (state_ch, energy_in_ch, k1, k1),
                                         jnp.float32)             # N(0,1e-10)
    u_energy = jax.random.normal(ks[5], (state_ch,), jnp.float32)

    wc1_sn = spectral_normalize(w_base_conv, u_base_conv, bound=False)
    wfc_sn = spectral_normalize(w_fc, u_fc, bound=True)
    wc2_sn = spectral_normalize(w_energy, u_energy, bound=True)
    bc1 = jnp.zeros((state_ch,), jnp.float32)
    bfc = jnp.zeros((ttl,), jnp.float32)
    bc2 = jnp.zeros((state_ch,), jnp.float32)

    params = {
        "wc1_flat": conv_weight_flat(wc1_sn),            # [Ch, k0*k0*Cin_conv] f32
        "bc1": bc1.reshape(state_ch, 1),
        "wfc_t": wfc_sn.T.astype(jnp.bfloat16),          # [Nin_fc, Ch*H*W] bf16
        "bfc": bfc.reshape(1, ttl),
        "wc2_flat": conv_weight_flat(wc2_sn),            # [Ch, k1*k1*energy_in] f32
        "bc2": bc2.reshape(state_ch, 1),
    }
    raw = {"wc1_4d": wc1_sn, "bc1": bc1, "wfc": wfc_sn, "bfc": bfc,
           "wc2_4d": wc2_sn, "bc2": bc2}

    x4d_a = jax.random.normal(ks[6], (B, 4, 8, 8), jnp.float32)
    x4d_b = jax.random.normal(ks[7], (B, 4, 32, 32), jnp.float32)
    x2d_a = jax.random.normal(ks[8], (B, 16), jnp.float32)
    x2d_b = jax.random.normal(ks[9], (B, 32), jnp.float32)
    pre_states = jax.random.normal(ks[10], (B, state_ch, H, W), jnp.float32)
    inputs = [x4d_a, x2d_a, x4d_b, x2d_b]

    # --- run fused kernel -----------------------------------------------------
    quad, out = forward(params, pre_states, inputs, (H, W), state_ch,
                        k0, p0, k1, p1)
    quad = jax.block_until_ready(quad)
    out = jax.block_until_ready(out)

    # --- correctness check vs pure-JAX f32 reference --------------------------
    # Tolerance is 5e-3 of the output scale: the FC path uses bf16 operands
    # (f32 accumulation), so ~1e-3-level relative deviations from the pure-f32
    # reference are expected; structural bugs would show up at O(1).
    quad_r, out_r = forward_ref(raw, pre_states, inputs, (H, W), state_ch,
                                k0, p0, k1, p1)
    out_scale = float(jnp.max(jnp.abs(out_r))) + 1e-30
    quad_scale = float(jnp.max(jnp.abs(quad_r))) + 1e-30
    np.testing.assert_allclose(np.asarray(out), np.asarray(out_r),
                               rtol=0, atol=5e-3 * out_scale)
    np.testing.assert_allclose(np.asarray(quad), np.asarray(quad_r),
                               rtol=0, atol=5e-3 * quad_scale)

    print("KERNEL_OK")
</pallas_src>

<mosaic_0001>
module attributes {stable_mosaic.version = 11 : i64} {
  func.func @_fused_kernel(%arg0: i32, %arg1: memref<2x8x256xf32, #tpu.memory_space<vmem>>, %arg2: memref<2x48xbf16, #tpu.memory_space<vmem>>, %arg3: memref<2x4x256xf32, #tpu.memory_space<vmem>>, %arg4: memref<4x72xf32, #tpu.memory_space<vmem>>, %arg5: memref<4x1xf32, #tpu.memory_space<vmem>>, %arg6: memref<48x1024xbf16, #tpu.memory_space<vmem>>, %arg7: memref<1x1024xf32, #tpu.memory_space<vmem>>, %arg8: memref<4x144xf32, #tpu.memory_space<vmem>>, %arg9: memref<4x1xf32, #tpu.memory_space<vmem>>, %arg10: memref<2x4x256xf32, #tpu.memory_space<vmem>>, %arg11: memref<2x1xf32, #tpu.memory_space<smem>>, %arg12: memref<16x1024xf32, #tpu.memory_space<vmem>>, %arg13: memref<72x512xf32, #tpu.memory_space<vmem>>, %arg14: memref<144x512xf32, #tpu.memory_space<vmem>>) attributes {dimension_semantics = [#tpu.dimension_semantics<parallel>], iteration_bounds = array<i64: 1>, scalar_prefetch = 0 : i64, scratch_operands = 3 : i64, tpu.core_type = #tpu.core_type<tc>, window_params = [{transform_indices = @transform_0, window_bounds = array<i64: 2, 8, 256>}, {transform_indices = @transform_1, window_bounds = array<i64: 2, 48>}, {transform_indices = @transform_2, window_bounds = array<i64: 2, 4, 256>}, {pipeline_mode = #tpu.pipeline_mode<synchronous>, transform_indices = @transform_3, window_bounds = array<i64: 4, 72>}, {pipeline_mode = #tpu.pipeline_mode<synchronous>, transform_indices = @transform_4, window_bounds = array<i64: 4, 1>}, {pipeline_mode = #tpu.pipeline_mode<synchronous>, transform_indices = @transform_5, window_bounds = array<i64: 48, 1024>}, {pipeline_mode = #tpu.pipeline_mode<synchronous>, transform_indices = @transform_6, window_bounds = array<i64: 1, 1024>}, {pipeline_mode = #tpu.pipeline_mode<synchronous>, transform_indices = @transform_7, window_bounds = array<i64: 4, 144>}, {pipeline_mode = #tpu.pipeline_mode<synchronous>, transform_indices = @transform_8, window_bounds = array<i64: 4, 1>}, {transform_indices = @transform_9, window_bounds = array<i64: 2, 4, 256>}, {transform_indices = @transform_10, window_bounds = array<i64: 2, 1>}]} {
    %cst = arith.constant 0.000000e+00 : f32
    %0 = vector.broadcast %cst : f32 to vector<16x128xf32>
    %c0 = arith.constant 0 : index
    %c0_0 = arith.constant 0 : index
    %1 = vector.load %arg12[%c0, %c0_0] : memref<16x1024xf32, #tpu.memory_space<vmem>>, vector<16x128xf32>
    tpu.vector_store %arg12[%c0, %c0_0], %0 {strides = array<i32>} : memref<16x1024xf32, #tpu.memory_space<vmem>>, vector<16x128xf32>,
    %c0_1 = arith.constant 0 : index
    %c384 = arith.constant 384 : index
    %2 = vector.load %arg12[%c0_1, %c384] : memref<16x1024xf32, #tpu.memory_space<vmem>>, vector<16x128xf32>
    tpu.vector_store %arg12[%c0_1, %c384], %0 {strides = array<i32>} : memref<16x1024xf32, #tpu.memory_space<vmem>>, vector<16x128xf32>,
    %c0_2 = arith.constant 0 : index
    %c512 = arith.constant 512 : index
    %3 = vector.load %arg12[%c0_2, %c512] : memref<16x1024xf32, #tpu.memory_space<vmem>>, vector<16x128xf32>
    tpu.vector_store %arg12[%c0_2, %c512], %0 {strides = array<i32>} : memref<16x1024xf32, #tpu.memory_space<vmem>>, vector<16x128xf32>,
    %c0_3 = arith.constant 0 : index
    %c896 = arith.constant 896 : index
    %4 = vector.load %arg12[%c0_3, %c896] : memref<16x1024xf32, #tpu.memory_space<vmem>>, vector<16x128xf32>
    tpu.vector_store %arg12[%c0_3, %c896], %0 {strides = array<i32>} : memref<16x1024xf32, #tpu.memory_space<vmem>>, vector<16x128xf32>,
    %c0_4 = arith.constant 0 : index
    %c0_5 = arith.constant 0 : index
    %c0_6 = arith.constant 0 : index
    %5 = vector.load %arg1[%c0_4, %c0_5, %c0_6] : memref<2x8x256xf32, #tpu.memory_space<vmem>>, vector<1x8x256xf32>
    %6 = vector.shape_cast %5 : vector<1x8x256xf32> to vector<8x256xf32>
    %c0_7 = arith.constant 0 : index
    %c128 = arith.constant 128 : index
    %7 = vector.load %arg12[%c0_7, %c128] : memref<16x1024xf32, #tpu.memory_space<vmem>>, vector<8x256xf32>
    tpu.vector_store %arg12[%c0_7, %c128], %6 {strides = array<i32>} : memref<16x1024xf32, #tpu.memory_space<vmem>>, vector<8x256xf32>,
    %c1 = arith.constant 1 : index
    %c0_8 = arith.constant 0 : index
    %c0_9 = arith.constant 0 : index
    %8 = vector.load %arg1[%c1, %c0_8, %c0_9] : memref<2x8x256xf32, #tpu.memory_space<vmem>>, vector<1x8x256xf32>
    %9 = vector.shape_cast %8 : vector<1x8x256xf32> to vector<8x256xf32>
    %c0_10 = arith.constant 0 : index
    %c640 = arith.constant 640 : index
    %10 = vector.load %arg12[%c0_10, %c640] : memref<16x1024xf32, #tpu.memory_space<vmem>>, vector<8x256xf32>
    tpu.vector_store %arg12[%c0_10, %c640], %9 {strides = array<i32>} : memref<16x1024xf32, #tpu.memory_space<vmem>>, vector<8x256xf32>,
    %11 = tpu.iota {dimensions = array<i32: 1>} : vector<1x256xi32>
    %c16_i32 = arith.constant 16 : i32
    %c0_i32 = arith.constant 0 : i32
    %12 = arith.cmpi eq, %c16_i32, %c0_i32 : i32
    %c1_i32 = arith.constant 1 : i32
    %13 = arith.select %12, %c1_i32, %c16_i32 : i32
    %14 = vector.broadcast %13 : i32 to vector<1x256xi32>
    %15 = arith.remsi %11, %14 : vector<1x256xi32>
    %c0_i32_11 = arith.constant 0 : i32
    %16 = vector.broadcast %c0_i32_11 : i32 to vector<1x256xi32>
    %17 = arith.cmpi ne, %15, %16 : vector<1x256xi32>
    %c0_i32_12 = arith.constant 0 : i32
    %18 = vector.broadcast %c0_i32_12 : i32 to vector<1x256xi32>
    %19 = arith.cmpi slt, %15, %18 : vector<1x256xi32>
    %c0_i32_13 = arith.constant 0 : i32
    %20 = arith.cmpi slt, %13, %c0_i32_13 : i32
    %21 = vector.broadcast %20 : i1 to vector<1x256xi1>
    %22 = vector.broadcast %21 : vector<1x256xi1> to vector<1x256xi1>
    %23 = arith.xori %19, %22 : vector<1x256xi1>
    %24 = arith.andi %23, %17 : vector<1x256xi1>
    %25 = vector.broadcast %13 : i32 to vector<1x256xi32>
    %26 = arith.addi %15, %25 : vector<1x256xi32>
    %27 = arith.select %24, %26, %15 : vector<1x256xi1>, vector<1x256xi32>
    %c-1_i32 = arith.constant -1 : i32
    %28 = vector.broadcast %c-1_i32 : i32 to vector<1x256xi32>
    %29 = arith.addi %27, %28 : vector<1x256xi32>
    %c0_i32_14 = arith.constant 0 : i32
    %30 = vector.broadcast %c0_i32_14 : i32 to vector<1x256xi32>
    %31 = arith.cmpi sge, %29, %30 : vector<1x256xi32>
    %c16_i32_15 = arith.constant 16 : i32
    %32 = vector.broadcast %c16_i32_15 : i32 to vector<1x256xi32>
    %33 = arith.cmpi slt, %29, %32 : vector<1x256xi32>
    %34 = arith.andi %31, %33 : vector<1x256xi1>
    %35 = arith.extui %34 : vector<1x256xi1> to vector<1x256xi32>
    %36 = arith.sitofp %35 : vector<1x256xi32> to vector<1x256xf32>
    %37 = vector.shape_cast %36 : vector<1x256xf32> to vector<1x256xf32>
    %38 = vector.broadcast %37 : vector<1x256xf32> to vector<8x256xf32>
    %c1_i32_16 = arith.constant 1 : i32
    %39 = vector.broadcast %c1_i32_16 : i32 to vector<1x256xi32>
    %40 = arith.addi %27, %39 : vector<1x256xi32>
    %c0_i32_17 = arith.constant 0 : i32
    %41 = vector.broadcast %c0_i32_17 : i32 to vector<1x256xi32>
    %42 = arith.cmpi sge, %40, %41 : vector<1x256xi32>
    %c16_i32_18 = arith.constant 16 : i32
    %43 = vector.broadcast %c16_i32_18 : i32 to vector<1x256xi32>
    %44 = arith.cmpi slt, %40, %43 : vector<1x256xi32>
    %45 = arith.andi %42, %44 : vector<1x256xi1>
    %46 = arith.extui %45 : vector<1x256xi1> to vector<1x256xi32>
    %47 = arith.sitofp %46 : vector<1x256xi32> to vector<1x256xf32>
    %48 = vector.shape_cast %47 : vector<1x256xf32> to vector<1x256xf32>
    %49 = vector.broadcast %48 : vector<1x256xf32> to vector<8x256xf32>
    %c0_19 = arith.constant 0 : index
    %c112 = arith.constant 112 : index
    %50 = vector.load %arg12[%c0_19, %c112] : memref<16x1024xf32, #tpu.memory_space<vmem>>, vector<8x256xf32>
    %c1_i32_20 = arith.constant 1 : i32
    %51 = tpu.dynamic_rotate %50 by %c1_i32_20 dim 1 : vector<8x256xf32>, i32 -> vector<8x256xf32>
    %52 = arith.mulf %51, %38 : vector<8x256xf32>
    %c0_21 = arith.constant 0 : index
    %c0_22 = arith.constant 0 : index
    %53 = vector.load %arg13[%c0_21, %c0_22] : memref<72x512xf32, #tpu.memory_space<vmem>>, vector<8x256xf32>
    tpu.vector_store %arg13[%c0_21, %c0_22], %52 {strides = array<i32>} : memref<72x512xf32, #tpu.memory_space<vmem>>, vector<8x256xf32>,
    %c8 = arith.constant 8 : index
    %c0_23 = arith.constant 0 : index
    %54 = vector.load %arg13[%c8, %c0_23] : memref<72x512xf32, #tpu.memory_space<vmem>>, vector<8x256xf32>
    tpu.vector_store %arg13[%c8, %c0_23], %50 {strides = array<i32>} : memref<72x512xf32, #tpu.memory_space<vmem>>, vector<8x256xf32>,
    %c255_i32 = arith.constant 255 : i32
    %55 = tpu.dynamic_rotate %50 by %c255_i32 dim 1 : vector<8x256xf32>, i32 -> vector<8x256xf32>
    %56 = arith.mulf %55, %49 : vector<8x256xf32>
    %c16 = arith.constant 16 : index
    %c0_24 = arith.constant 0 : index
    %57 = vector.load %arg13[%c16, %c0_24] : memref<72x512xf32, #tpu.memory_space<vmem>>, vector<8x256xf32>
    tpu.vector_store %arg13[%c16, %c0_24], %56 {strides = array<i32>} : memref<72x512xf32, #tpu.memory_space<vmem>>, vector<8x256xf32>,
    %c0_25 = arith.constant 0 : index
    %c624 = arith.constant 624 : index
    %58 = vector.load %arg12[%c0_25, %c624] : memref<16x1024xf32, #tpu.memory_space<vmem>>, vector<8x256xf32>
    %c1_i32_26 = arith.constant 1 : i32
    %59 = tpu.dynamic_rotate %58 by %c1_i32_26 dim 1 : vector<8x256xf32>, i32 -> vector<8x256xf32>
    %60 = arith.mulf %59, %38 : vector<8x256xf32>
    %c0_27 = arith.constant 0 : index
    %c256 = arith.constant 256 : index
    %61 = vector.load %arg13[%c0_27, %c256] : memref<72x512xf32, #tpu.memory_space<vmem>>, vector<8x256xf32>
    tpu.vector_store %arg13[%c0_27, %c256], %60 {strides = array<i32>} : memref<72x512xf32, #tpu.memory_space<vmem>>, vector<8x256xf32>,
    %c8_28 = arith.constant 8 : index
    %c256_29 = arith.constant 256 : index
    %62 = vector.load %arg13[%c8_28, %c256_29] : memref<72x512xf32, #tpu.memory_space<vmem>>, vector<8x256xf32>
    tpu.vector_store %arg13[%c8_28, %c256_29], %58 {strides = array<i32>} : memref<72x512xf32, #tpu.memory_space<vmem>>, vector<8x256xf32>,
    %c255_i32_30 = arith.constant 255 : i32
    %63 = tpu.dynamic_rotate %58 by %c255_i32_30 dim 1 : vector<8x256xf32>, i32 -> vector<8x256xf32>
    %64 = arith.mulf %63, %49 : vector<8x256xf32>
    %c16_31 = arith.constant 16 : index
    %c256_32 = arith.constant 256 : index
    %65 = vector.load %arg13[%c16_31, %c256_32] : memref<72x512xf32, #tpu.memory_space<vmem>>, vector<8x256xf32>
    tpu.vector_store %arg13[%c16_31, %c256_32], %64 {strides = array<i32>} : memref<72x512xf32, #tpu.memory_space<vmem>>, vector<8x256xf32>,
    %c0_33 = arith.constant 0 : index
    %c128_34 = arith.constant 128 : index
    %66 = vector.load %arg12[%c0_33, %c128_34] : memref<16x1024xf32, #tpu.memory_space<vmem>>, vector<8x256xf32>
    %c1_i32_35 = arith.constant 1 : i32
    %67 = tpu.dynamic_rotate %66 by %c1_i32_35 dim 1 : vector<8x256xf32>, i32 -> vector<8x256xf32>
    %68 = arith.mulf %67, %38 : vector<8x256xf32>
    %c24 = arith.constant 24 : index
    %c0_36 = arith.constant 0 : index
    %69 = vector.load %arg13[%c24, %c0_36] : memref<72x512xf32, #tpu.memory_space<vmem>>, vector<8x256xf32>
    tpu.vector_store %arg13[%c24, %c0_36], %68 {strides = array<i32>} : memref<72x512xf32, #tpu.memory_space<vmem>>, vector<8x256xf32>,
    %c32 = arith.constant 32 : index
    %c0_37 = arith.constant 0 : index
    %70 = vector.load %arg13[%c32, %c0_37] : memref<72x512xf32, #tpu.memory_space<vmem>>, vector<8x256xf32>
    tpu.vector_store %arg13[%c32, %c0_37], %66 {strides = array<i32>} : memref<72x512xf32, #tpu.memory_space<vmem>>, vector<8x256xf32>,
    %c255_i32_38 = arith.constant 255 : i32
    %71 = tpu.dynamic_rotate %66 by %c255_i32_38 dim 1 : vector<8x256xf32>, i32 -> vector<8x256xf32>
    %72 = arith.mulf %71, %49 : vector<8x256xf32>
    %c40 = arith.constant 40 : index
    %c0_39 = arith.constant 0 : index
    %73 = vector.load %arg13[%c40, %c0_39] : memref<72x512xf32, #tpu.memory_space<vmem>>, vector<8x256xf32>
    tpu.vector_store %arg13[%c40, %c0_39], %72 {strides = array<i32>} : memref<72x512xf32, #tpu.memory_space<vmem>>, vector<8x256xf32>,
    %c0_40 = arith.constant 0 : index
    %c640_41 = arith.constant 640 : index
    %74 = vector.load %arg12[%c0_40, %c640_41] : memref<16x1024xf32, #tpu.memory_space<vmem>>, vector<8x256xf32>
    %c1_i32_42 = arith.constant 1 : i32
    %75 = tpu.dynamic_rotate %74 by %c1_i32_42 dim 1 : vector<8x256xf32>, i32 -> vector<8x256xf32>
    %76 = arith.mulf %75, %38 : vector<8x256xf32>
    %c24_43 = arith.constant 24 : index
    %c256_44 = arith.constant 256 : index
    %77 = vector.load %arg13[%c24_43, %c256_44] : memref<72x512xf32, #tpu.memory_space<vmem>>, vector<8x256xf32>
    tpu.vector_store %arg13[%c24_43, %c256_44], %76 {strides = array<i32>} : memref<72x512xf32, #tpu.memory_space<vmem>>, vector<8x256xf32>,
    %c32_45 = arith.constant 32 : index
    %c256_46 = arith.constant 256 : index
    %78 = vector.load %arg13[%c32_45, %c256_46] : memref<72x512xf32, #tpu.memory_space<vmem>>, vector<8x256xf32>
    tpu.vector_store %arg13[%c32_45, %c256_46], %74 {strides = array<i32>} : memref<72x512xf32, #tpu.memory_space<vmem>>, vector<8x256xf32>,
    %c255_i32_47 = arith.constant 255 : i32
    %79 = tpu.dynamic_rotate %74 by %c255_i32_47 dim 1 : vector<8x256xf32>, i32 -> vector<8x256xf32>
    %80 = arith.mulf %79, %49 : vector<8x256xf32>
    %c40_48 = arith.constant 40 : index
    %c256_49 = arith.constant 256 : index
    %81 = vector.load %arg13[%c40_48, %c256_49] : memref<72x512xf32, #tpu.memory_space<vmem>>, vector<8x256xf32>
    tpu.vector_store %arg13[%c40_48, %c256_49], %80 {strides = array<i32>} : memref<72x512xf32, #tpu.memory_space<vmem>>, vector<8x256xf32>,
    %c0_50 = arith.constant 0 : index
    %c144 = arith.constant 144 : index
    %82 = vector.load %arg12[%c0_50, %c144] : memref<16x1024xf32, #tpu.memory_space<vmem>>, vector<8x256xf32>
    %c1_i32_51 = arith.constant 1 : i32
    %83 = tpu.dynamic_rotate %82 by %c1_i32_51 dim 1 : vector<8x256xf32>, i32 -> vector<8x256xf32>
    %84 = arith.mulf %83, %38 : vector<8x256xf32>
    %c48 = arith.constant 48 : index
    %c0_52 = arith.constant 0 : index
    %85 = vector.load %arg13[%c48, %c0_52] : memref<72x512xf32, #tpu.memory_space<vmem>>, vector<8x256xf32>
    tpu.vector_store %arg13[%c48, %c0_52], %84 {strides = array<i32>} : memref<72x512xf32, #tpu.memory_space<vmem>>, vector<8x256xf32>,
    %c56 = arith.constant 56 : index
    %c0_53 = arith.constant 0 : index
    %86 = vector.load %arg13[%c56, %c0_53] : memref<72x512xf32, #tpu.memory_space<vmem>>, vector<8x256xf32>
    tpu.vector_store %arg13[%c56, %c0_53], %82 {strides = array<i32>} : memref<72x512xf32, #tpu.memory_space<vmem>>, vector<8x256xf32>,
    %c255_i32_54 = arith.constant 255 : i32
    %87 = tpu.dynamic_rotate %82 by %c255_i32_54 dim 1 : vector<8x256xf32>, i32 -> vector<8x256xf32>
    %88 = arith.mulf %87, %49 : vector<8x256xf32>
    %c64 = arith.constant 64 : index
    %c0_55 = arith.constant 0 : index
    %89 = vector.load %arg13[%c64, %c0_55] : memref<72x512xf32, #tpu.memory_space<vmem>>, vector<8x256xf32>
    tpu.vector_store %arg13[%c64, %c0_55], %88 {strides = array<i32>} : memref<72x512xf32, #tpu.memory_space<vmem>>, vector<8x256xf32>,
    %c0_56 = arith.constant 0 : index
    %c656 = arith.constant 656 : index
    %90 = vector.load %arg12[%c0_56, %c656] : memref<16x1024xf32, #tpu.memory_space<vmem>>, vector<8x256xf32>
    %c1_i32_57 = arith.constant 1 : i32
    %91 = tpu.dynamic_rotate %90 by %c1_i32_57 dim 1 : vector<8x256xf32>, i32 -> vector<8x256xf32>
    %92 = arith.mulf %91, %38 : vector<8x256xf32>
    %c48_58 = arith.constant 48 : index
    %c256_59 = arith.constant 256 : index
    %93 = vector.load %arg13[%c48_58, %c256_59] : memref<72x512xf32, #tpu.memory_space<vmem>>, vector<8x256xf32>
    tpu.vector_store %arg13[%c48_58, %c256_59], %92 {strides = array<i32>} : memref<72x512xf32, #tpu.memory_space<vmem>>, vector<8x256xf32>,
    %c56_60 = arith.constant 56 : index
    %c256_61 = arith.constant 256 : index
    %94 = vector.load %arg13[%c56_60, %c256_61] : memref<72x512xf32, #tpu.memory_space<vmem>>, vector<8x256xf32>
    tpu.vector_store %arg13[%c56_60, %c256_61], %90 {strides = array<i32>} : memref<72x512xf32, #tpu.memory_space<vmem>>, vector<8x256xf32>,
    %c255_i32_62 = arith.constant 255 : i32
    %95 = tpu.dynamic_rotate %90 by %c255_i32_62 dim 1 : vector<8x256xf32>, i32 -> vector<8x256xf32>
    %96 = arith.mulf %95, %49 : vector<8x256xf32>
    %c64_63 = arith.constant 64 : index
    %c256_64 = arith.constant 256 : index
    %97 = vector.load %arg13[%c64_63, %c256_64] : memref<72x512xf32, #tpu.memory_space<vmem>>, vector<8x256xf32>
    tpu.vector_store %arg13[%c64_63, %c256_64], %96 {strides = array<i32>} : memref<72x512xf32, #tpu.memory_space<vmem>>, vector<8x256xf32>,
    %c0_65 = arith.constant 0 : index
    %c0_66 = arith.constant 0 : index
    %98 = vector.load %arg4[%c0_65, %c0_66] : memref<4x72xf32, #tpu.memory_space<vmem>>, vector<4x72xf32>
    %c0_67 = arith.constant 0 : index
    %c0_68 = arith.constant 0 : index
    %99 = vector.load %arg13[%c0_67, %c0_68] : memref<72x512xf32, #tpu.memory_space<vmem>>, vector<72x512xf32>
    %cst_69 = arith.constant dense<0.000000e+00> : vector<4x512xf32>
    %100 = tpu.matmul %98, %99, %cst_69 {dimension_numbers = #tpu.dot_dimension_numbers<[1], [0], [0], [1], [0, 0, 1, 1], [], []>} : vector<4x72xf32>, vector<72x512xf32>, vector<4x512xf32> -> vector<4x512xf32>
    %c0_70 = arith.constant 0 : index
    %c0_71 = arith.constant 0 : index
    %101 = vector.load %arg5[%c0_70, %c0_71] : memref<4x1xf32, #tpu.memory_space<vmem>>, vector<4x1xf32>
    %102 = vector.broadcast %101 : vector<4x1xf32> to vector<4x512xf32>
    %103 = arith.addf %100, %102 : vector<4x512xf32>
    %104 = vector.extract_strided_slice %103 {offsets = [0, 0], sizes = [4, 256], strides = [1, 1]} : vector<4x512xf32> to vector<4x256xf32>
    %c8_72 = arith.constant 8 : index
    %c128_73 = arith.constant 128 : index
    %105 = vector.load %arg12[%c8_72, %c128_73] : memref<16x1024xf32, #tpu.memory_space<vmem>>, vector<4x256xf32>
    tpu.vector_store %arg12[%c8_72, %c128_73], %104 {strides = array<i32>} : memref<16x1024xf32, #tpu.memory_space<vmem>>, vector<4x256xf32>,
    %106 = vector.extract_strided_slice %103 {offsets = [0, 256], sizes = [4, 256], strides = [1, 1]} : vector<4x512xf32> to vector<4x256xf32>
    %c8_74 = arith.constant 8 : index
    %c640_75 = arith.constant 640 : index
    %107 = vector.load %arg12[%c8_74, %c640_75] : memref<16x1024xf32, #tpu.memory_space<vmem>>, vector<4x256xf32>
    tpu.vector_store %arg12[%c8_74, %c640_75], %106 {strides = array<i32>} : memref<16x1024xf32, #tpu.memory_space<vmem>>, vector<4x256xf32>,
    %c0_76 = arith.constant 0 : index
    %c0_77 = arith.constant 0 : index
    %108 = vector.load %arg2[%c0_76, %c0_77] : memref<2x48xbf16, #tpu.memory_space<vmem>>, vector<2x48xbf16>
    %c0_78 = arith.constant 0 : index
    %c0_79 = arith.constant 0 : index
    %109 = vector.load %arg6[%c0_78, %c0_79] : memref<48x1024xbf16, #tpu.memory_space<vmem>>, vector<48x1024xbf16>
    %cst_80 = arith.constant dense<0.000000e+00> : vector<2x1024xf32>
    %110 = tpu.matmul %108, %109, %cst_80 {dimension_numbers = #tpu.dot_dimension_numbers<[1], [0], [0], [1], [0, 0, 1, 1], [], []>} : vector<2x48xbf16>, vector<48x1024xbf16>, vector<2x1024xf32> -> vector<2x1024xf32>
    %c0_81 = arith.constant 0 : index
    %c0_82 = arith.constant 0 : index
    %111 = vector.load %arg7[%c0_81, %c0_82] : memref<1x1024xf32, #tpu.memory_space<vmem>>, vector<1x1024xf32>
    %112 = vector.broadcast %111 : vector<1x1024xf32> to vector<2x1024xf32>
    %113 = arith.addf %110, %112 : vector<2x1024xf32>
    %cst_83 = arith.constant 0.00999999977 : f32
    %cst_84 = arith.constant 0.000000e+00 : f32
    %114 = vector.broadcast %cst_84 : f32 to vector<2x1024xf32>
    %115 = arith.cmpf oge, %113, %114 : vector<2x1024xf32>
    %116 = vector.broadcast %cst_83 : f32 to vector<2x1024xf32>
    %117 = arith.mulf %116, %113 : vector<2x1024xf32>
    %118 = arith.select %115, %113, %117 : vector<2x1024xi1>, vector<2x1024xf32>
    %119 = vector.extract_strided_slice %118 {offsets = [0, 0], sizes = [1, 1024], strides = [1, 1]} : vector<2x1024xf32> to vector<1x1024xf32>
    %120 = vector.shape_cast %119 : vector<1x1024xf32> to vector<4x256xf32>
    %c12 = arith.constant 12 : index
    %c128_85 = arith.constant 128 : index
    %121 = vector.load %arg12[%c12, %c128_85] : memref<16x1024xf32, #tpu.memory_space<vmem>>, vector<4x256xf32>
    tpu.vector_store %arg12[%c12, %c128_85], %120 {strides = array<i32>} : memref<16x1024xf32, #tpu.memory_space<vmem>>, vector<4x256xf32>,
    %122 = vector.extract_strided_slice %118 {offsets = [1, 0], sizes = [1, 1024], strides = [1, 1]} : vector<2x1024xf32> to vector<1x1024xf32>
    %123 = vector.shape_cast %122 : vector<1x1024xf32> to vector<4x256xf32>
    %c12_86 = arith.constant 12 : index
    %c640_87 = arith.constant 640 : index
    %124 = vector.load %arg12[%c12_86, %c640_87] : memref<16x1024xf32, #tpu.memory_space<vmem>>, vector<4x256xf32>
    tpu.vector_store %arg12[%c12_86, %c640_87], %123 {strides = array<i32>} : memref<16x1024xf32, #tpu.memory_space<vmem>>, vector<4x256xf32>,
    %c-1_i32_88 = arith.constant -1 : i32
    %125 = vector.broadcast %c-1_i32_88 : i32 to vector<1x256xi32>
    %126 = arith.addi %27, %125 : vector<1x256xi32>
    %c0_i32_89 = arith.constant 0 : i32
    %127 = vector.broadcast %c0_i32_89 : i32 to vector<1x256xi32>
    %128 = arith.cmpi sge, %126, %127 : vector<1x256xi32>
    %c16_i32_90 = arith.constant 16 : i32
    %129 = vector.broadcast %c16_i32_90 : i32 to vector<1x256xi32>
    %130 = arith.cmpi slt, %126, %129 : vector<1x256xi32>
    %131 = arith.andi %128, %130 : vector<1x256xi1>
    %132 = arith.extui %131 : vector<1x256xi1> to vector<1x256xi32>
    %133 = arith.sitofp %132 : vector<1x256xi32> to vector<1x256xf32>
    %134 = vector.shape_cast %133 : vector<1x256xf32> to vector<1x256xf32>
    %135 = vector.broadcast %134 : vector<1x256xf32> to vector<16x256xf32>
    %c1_i32_91 = arith.constant 1 : i32
    %136 = vector.broadcast %c1_i32_91 : i32 to vector<1x256xi32>
    %137 = arith.addi %27, %136 : vector<1x256xi32>
    %c0_i32_92 = arith.constant 0 : i32
    %138 = vector.broadcast %c0_i32_92 : i32 to vector<1x256xi32>
    %139 = arith.cmpi sge, %137, %138 : vector<1x256xi32>
    %c16_i32_93 = arith.constant 16 : i32
    %140 = vector.broadcast %c16_i32_93 : i32 to vector<1x256xi32>
    %141 = arith.cmpi slt, %137, %140 : vector<1x256xi32>
    %142 = arith.andi %139, %141 : vector<1x256xi1>
    %143 = arith.extui %142 : vector<1x256xi1> to vector<1x256xi32>
    %144 = arith.sitofp %143 : vector<1x256xi32> to vector<1x256xf32>
    %145 = vector.shape_cast %144 : vector<1x256xf32> to vector<1x256xf32>
    %146 = vector.broadcast %145 : vector<1x256xf32> to vector<16x256xf32>
    %c0_94 = arith.constant 0 : index
    %c112_95 = arith.constant 112 : index
    %147 = vector.load %arg12[%c0_94, %c112_95] : memref<16x1024xf32, #tpu.memory_space<vmem>>, vector<16x256xf32>
    %c1_i32_96 = arith.constant 1 : i32
    %148 = tpu.dynamic_rotate %147 by %c1_i32_96 dim 1 : vector<16x256xf32>, i32 -> vector<16x256xf32>
    %149 = arith.mulf %148, %135 : vector<16x256xf32>
    %c0_97 = arith.constant 0 : index
    %c0_98 = arith.constant 0 : index
    %150 = vector.load %arg14[%c0_97, %c0_98] : memref<144x512xf32, #tpu.memory_space<vmem>>, vector<16x256xf32>
    tpu.vector_store %arg14[%c0_97, %c0_98], %149 {strides = array<i32>} : memref<144x512xf32, #tpu.memory_space<vmem>>, vector<16x256xf32>,
    %c16_99 = arith.constant 16 : index
    %c0_100 = arith.constant 0 : index
    %151 = vector.load %arg14[%c16_99, %c0_100] : memref<144x512xf32, #tpu.memory_space<vmem>>, vector<16x256xf32>
    tpu.vector_store %arg14[%c16_99, %c0_100], %147 {strides = array<i32>} : memref<144x512xf32, #tpu.memory_space<vmem>>, vector<16x256xf32>,
    %c255_i32_101 = arith.constant 255 : i32
    %152 = tpu.dynamic_rotate %147 by %c255_i32_101 dim 1 : vector<16x256xf32>, i32 -> vector<16x256xf32>
    %153 = arith.mulf %152, %146 : vector<16x256xf32>
    %c32_102 = arith.constant 32 : index
    %c0_103 = arith.constant 0 : index
    %154 = vector.load %arg14[%c32_102, %c0_103] : memref<144x512xf32, #tpu.memory_space<vmem>>, vector<16x256xf32>
    tpu.vector_store %arg14[%c32_102, %c0_103], %153 {strides = array<i32>} : memref<144x512xf32, #tpu.memory_space<vmem>>, vector<16x256xf32>,
    %c0_104 = arith.constant 0 : index
    %c624_105 = arith.constant 624 : index
    %155 = vector.load %arg12[%c0_104, %c624_105] : memref<16x1024xf32, #tpu.memory_space<vmem>>, vector<16x256xf32>
    %c1_i32_106 = arith.constant 1 : i32
    %156 = tpu.dynamic_rotate %155 by %c1_i32_106 dim 1 : vector<16x256xf32>, i32 -> vector<16x256xf32>
    %157 = arith.mulf %156, %135 : vector<16x256xf32>
    %c0_107 = arith.constant 0 : index
    %c256_108 = arith.constant 256 : index
    %158 = vector.load %arg14[%c0_107, %c256_108] : memref<144x512xf32, #tpu.memory_space<vmem>>, vector<16x256xf32>
    tpu.vector_store %arg14[%c0_107, %c256_108], %157 {strides = array<i32>} : memref<144x512xf32, #tpu.memory_space<vmem>>, vector<16x256xf32>,
    %c16_109 = arith.constant 16 : index
    %c256_110 = arith.constant 256 : index
    %159 = vector.load %arg14[%c16_109, %c256_110] : memref<144x512xf32, #tpu.memory_space<vmem>>, vector<16x256xf32>
    tpu.vector_store %arg14[%c16_109, %c256_110], %155 {strides = array<i32>} : memref<144x512xf32, #tpu.memory_space<vmem>>, vector<16x256xf32>,
    %c255_i32_111 = arith.constant 255 : i32
    %160 = tpu.dynamic_rotate %155 by %c255_i32_111 dim 1 : vector<16x256xf32>, i32 -> vector<16x256xf32>
    %161 = arith.mulf %160, %146 : vector<16x256xf32>
    %c32_112 = arith.constant 32 : index
    %c256_113 = arith.constant 256 : index
    %162 = vector.load %arg14[%c32_112, %c256_113] : memref<144x512xf32, #tpu.memory_space<vmem>>, vector<16x256xf32>
    tpu.vector_store %arg14[%c32_112, %c256_113], %161 {strides = array<i32>} : memref<144x512xf32, #tpu.memory_space<vmem>>, vector<16x256xf32>,
    %c0_114 = arith.constant 0 : index
    %c128_115 = arith.constant 128 : index
    %163 = vector.load %arg12[%c0_114, %c128_115] : memref<16x1024xf32, #tpu.memory_space<vmem>>, vector<16x256xf32>
    %c1_i32_116 = arith.constant 1 : i32
    %164 = tpu.dynamic_rotate %163 by %c1_i32_116 dim 1 : vector<16x256xf32>, i32 -> vector<16x256xf32>
    %165 = arith.mulf %164, %135 : vector<16x256xf32>
    %c48_117 = arith.constant 48 : index
    %c0_118 = arith.constant 0 : index
    %166 = vector.load %arg14[%c48_117, %c0_118] : memref<144x512xf32, #tpu.memory_space<vmem>>, vector<16x256xf32>
    tpu.vector_store %arg14[%c48_117, %c0_118], %165 {strides = array<i32>} : memref<144x512xf32, #tpu.memory_space<vmem>>, vector<16x256xf32>,
    %c64_119 = arith.constant 64 : index
    %c0_120 = arith.constant 0 : index
    %167 = vector.load %arg14[%c64_119, %c0_120] : memref<144x512xf32, #tpu.memory_space<vmem>>, vector<16x256xf32>
    tpu.vector_store %arg14[%c64_119, %c0_120], %163 {strides = array<i32>} : memref<144x512xf32, #tpu.memory_space<vmem>>, vector<16x256xf32>,
    %c255_i32_121 = arith.constant 255 : i32
    %168 = tpu.dynamic_rotate %163 by %c255_i32_121 dim 1 : vector<16x256xf32>, i32 -> vector<16x256xf32>
    %169 = arith.mulf %168, %146 : vector<16x256xf32>
    %c80 = arith.constant 80 : index
    %c0_122 = arith.constant 0 : index
    %170 = vector.load %arg14[%c80, %c0_122] : memref<144x512xf32, #tpu.memory_space<vmem>>, vector<16x256xf32>
    tpu.vector_store %arg14[%c80, %c0_122], %169 {strides = array<i32>} : memref<144x512xf32, #tpu.memory_space<vmem>>, vector<16x256xf32>,
    %c0_123 = arith.constant 0 : index
    %c640_124 = arith.constant 640 : index
    %171 = vector.load %arg12[%c0_123, %c640_124] : memref<16x1024xf32, #tpu.memory_space<vmem>>, vector<16x256xf32>
    %c1_i32_125 = arith.constant 1 : i32
    %172 = tpu.dynamic_rotate %171 by %c1_i32_125 dim 1 : vector<16x256xf32>, i32 -> vector<16x256xf32>
    %173 = arith.mulf %172, %135 : vector<16x256xf32>
    %c48_126 = arith.constant 48 : index
    %c256_127 = arith.constant 256 : index
    %174 = vector.load %arg14[%c48_126, %c256_127] : memref<144x512xf32, #tpu.memory_space<vmem>>, vector<16x256xf32>
    tpu.vector_store %arg14[%c48_126, %c256_127], %173 {strides = array<i32>} : memref<144x512xf32, #tpu.memory_space<vmem>>, vector<16x256xf32>,
    %c64_128 = arith.constant 64 : index
    %c256_129 = arith.constant 256 : index
    %175 = vector.load %arg14[%c64_128, %c256_129] : memref<144x512xf32, #tpu.memory_space<vmem>>, vector<16x256xf32>
    tpu.vector_store %arg14[%c64_128, %c256_129], %171 {strides = array<i32>} : memref<144x512xf32, #tpu.memory_space<vmem>>, vector<16x256xf32>,
    %c255_i32_130 = arith.constant 255 : i32
    %176 = tpu.dynamic_rotate %171 by %c255_i32_130 dim 1 : vector<16x256xf32>, i32 -> vector<16x256xf32>
    %177 = arith.mulf %176, %146 : vector<16x256xf32>
    %c80_131 = arith.constant 80 : index
    %c256_132 = arith.constant 256 : index
    %178 = vector.load %arg14[%c80_131, %c256_132] : memref<144x512xf32, #tpu.memory_space<vmem>>, vector<16x256xf32>
    tpu.vector_store %arg14[%c80_131, %c256_132], %177 {strides = array<i32>} : memref<144x512xf32, #tpu.memory_space<vmem>>, vector<16x256xf32>,
    %c0_133 = arith.constant 0 : index
    %c144_134 = arith.constant 144 : index
    %179 = vector.load %arg12[%c0_133, %c144_134] : memref<16x1024xf32, #tpu.memory_space<vmem>>, vector<16x256xf32>
    %c1_i32_135 = arith.constant 1 : i32
    %180 = tpu.dynamic_rotate %179 by %c1_i32_135 dim 1 : vector<16x256xf32>, i32 -> vector<16x256xf32>
    %181 = arith.mulf %180, %135 : vector<16x256xf32>
    %c96 = arith.constant 96 : index
    %c0_136 = arith.constant 0 : index
    %182 = vector.load %arg14[%c96, %c0_136] : memref<144x512xf32, #tpu.memory_space<vmem>>, vector<16x256xf32>
    tpu.vector_store %arg14[%c96, %c0_136], %181 {strides = array<i32>} : memref<144x512xf32, #tpu.memory_space<vmem>>, vector<16x256xf32>,
    %c112_137 = arith.constant 112 : index
    %c0_138 = arith.constant 0 : index
    %183 = vector.load %arg14[%c112_137, %c0_138] : memref<144x512xf32, #tpu.memory_space<vmem>>, vector<16x256xf32>
    tpu.vector_store %arg14[%c112_137, %c0_138], %179 {strides = array<i32>} : memref<144x512xf32, #tpu.memory_space<vmem>>, vector<16x256xf32>,
    %c255_i32_139 = arith.constant 255 : i32
    %184 = tpu.dynamic_rotate %179 by %c255_i32_139 dim 1 : vector<16x256xf32>, i32 -> vector<16x256xf32>
    %185 = arith.mulf %184, %146 : vector<16x256xf32>
    %c128_140 = arith.constant 128 : index
    %c0_141 = arith.constant 0 : index
    %186 = vector.load %arg14[%c128_140, %c0_141] : memref<144x512xf32, #tpu.memory_space<vmem>>, vector<16x256xf32>
    tpu.vector_store %arg14[%c128_140, %c0_141], %185 {strides = array<i32>} : memref<144x512xf32, #tpu.memory_space<vmem>>, vector<16x256xf32>,
    %c0_142 = arith.constant 0 : index
    %c656_143 = arith.constant 656 : index
    %187 = vector.load %arg12[%c0_142, %c656_143] : memref<16x1024xf32, #tpu.memory_space<vmem>>, vector<16x256xf32>
    %c1_i32_144 = arith.constant 1 : i32
    %188 = tpu.dynamic_rotate %187 by %c1_i32_144 dim 1 : vector<16x256xf32>, i32 -> vector<16x256xf32>
    %189 = arith.mulf %188, %135 : vector<16x256xf32>
    %c96_145 = arith.constant 96 : index
    %c256_146 = arith.constant 256 : index
    %190 = vector.load %arg14[%c96_145, %c256_146] : memref<144x512xf32, #tpu.memory_space<vmem>>, vector<16x256xf32>
    tpu.vector_store %arg14[%c96_145, %c256_146], %189 {strides = array<i32>} : memref<144x512xf32, #tpu.memory_space<vmem>>, vector<16x256xf32>,
    %c112_147 = arith.constant 112 : index
    %c256_148 = arith.constant 256 : index
    %191 = vector.load %arg14[%c112_147, %c256_148] : memref<144x512xf32, #tpu.memory_space<vmem>>, vector<16x256xf32>
    tpu.vector_store %arg14[%c112_147, %c256_148], %187 {strides = array<i32>} : memref<144x512xf32, #tpu.memory_space<vmem>>, vector<16x256xf32>,
    %c255_i32_149 = arith.constant 255 : i32
    %192 = tpu.dynamic_rotate %187 by %c255_i32_149 dim 1 : vector<16x256xf32>, i32 -> vector<16x256xf32>
    %193 = arith.mulf %192, %146 : vector<16x256xf32>
    %c128_150 = arith.constant 128 : index
    %c256_151 = arith.constant 256 : index
    %194 = vector.load %arg14[%c128_150, %c256_151] : memref<144x512xf32, #tpu.memory_space<vmem>>, vector<16x256xf32>
    tpu.vector_store %arg14[%c128_150, %c256_151], %193 {strides = array<i32>} : memref<144x512xf32, #tpu.memory_space<vmem>>, vector<16x256xf32>,
    %c0_152 = arith.constant 0 : index
    %c0_153 = arith.constant 0 : index
    %195 = vector.load %arg8[%c0_152, %c0_153] : memref<4x144xf32, #tpu.memory_space<vmem>>, vector<4x144xf32>
    %c0_154 = arith.constant 0 : index
    %c0_155 = arith.constant 0 : index
    %196 = vector.load %arg14[%c0_154, %c0_155] : memref<144x512xf32, #tpu.memory_space<vmem>>, vector<144x512xf32>
    %cst_156 = arith.constant dense<0.000000e+00> : vector<4x512xf32>
    %197 = tpu.matmul %195, %196, %cst_156 {dimension_numbers = #tpu.dot_dimension_numbers<[1], [0], [0], [1], [0, 0, 1, 1], [], []>} : vector<4x144xf32>, vector<144x512xf32>, vector<4x512xf32> -> vector<4x512xf32>
    %c0_157 = arith.constant 0 : index
    %c0_158 = arith.constant 0 : index
    %198 = vector.load %arg9[%c0_157, %c0_158] : memref<4x1xf32, #tpu.memory_space<vmem>>, vector<4x1xf32>
    %199 = vector.broadcast %198 : vector<4x1xf32> to vector<4x512xf32>
    %200 = arith.addf %197, %199 : vector<4x512xf32>
    %cst_159 = arith.constant 0.00999999977 : f32
    %cst_160 = arith.constant 0.000000e+00 : f32
    %201 = vector.broadcast %cst_160 : f32 to vector<4x512xf32>
    %202 = arith.cmpf oge, %200, %201 : vector<4x512xf32>
    %203 = vector.broadcast %cst_159 : f32 to vector<4x512xf32>
    %204 = arith.mulf %203, %200 : vector<4x512xf32>
    %205 = arith.select %202, %200, %204 : vector<4x512xi1>, vector<4x512xf32>
    %206 = vector.extract_strided_slice %205 {offsets = [0, 0], sizes = [4, 256], strides = [1, 1]} : vector<4x512xf32> to vector<4x256xf32>
    %c0_161 = arith.constant 0 : index
    %c0_162 = arith.constant 0 : index
    %c0_163 = arith.constant 0 : index
    %207 = vector.load %arg10[%c0_161, %c0_162, %c0_163] : memref<2x4x256xf32, #tpu.memory_space<vmem>>, vector<1x4x256xf32>
    %208 = vector.shape_cast %207 : vector<1x4x256xf32> to vector<4x256xf32>
    %209 = vector.shape_cast %206 : vector<4x256xf32> to vector<1x4x256xf32>
    tpu.vector_store %arg10[%c0_161, %c0_162, %c0_163], %209 {strides = array<i32>} : memref<2x4x256xf32, #tpu.memory_space<vmem>>, vector<1x4x256xf32>,
    %c0_164 = arith.constant 0 : index
    %c0_165 = arith.constant 0 : index
    %c0_166 = arith.constant 0 : index
    %210 = vector.load %arg3[%c0_164, %c0_165, %c0_166] : memref<2x4x256xf32, #tpu.memory_space<vmem>>, vector<1x4x256xf32>
    %211 = vector.shape_cast %210 : vector<1x4x256xf32> to vector<4x256xf32>
    %212 = arith.mulf %206, %211 : vector<4x256xf32>
    %213 = vector.shape_cast %212 : vector<4x256xf32> to vector<1x4x256xf32>
    %cst_167 = arith.constant dense<0.000000e+00> : vector<1xf32>
    %214 = vector.multi_reduction <add>, %213, %cst_167 [1, 2] : vector<1x4x256xf32> to vector<1xf32>
    %215 = vector.shape_cast %214 : vector<1xf32> to vector<1x1x1xf32>
    %216 = vector.extract %215[0, 0, 0] : f32 from vector<1x1x1xf32>
    %cst_168 = arith.constant 5.000000e-01 : f32
    %217 = arith.mulf %cst_168, %216 : f32
    %c0_169 = arith.constant 0 : index
    %c0_170 = arith.constant 0 : index
    %218 = memref.load %arg11[%c0_169, %c0_170] : memref<2x1xf32, #tpu.memory_space<smem>>
    memref.store %217, %arg11[%c0_169, %c0_170] : memref<2x1xf32, #tpu.memory_space<smem>>
    %219 = vector.extract_strided_slice %205 {offsets = [0, 256], sizes = [4, 256], strides = [1, 1]} : vector<4x512xf32> to vector<4x256xf32>
    %c1_171 = arith.constant 1 : index
    %c0_172 = arith.constant 0 : index
    %c0_173 = arith.constant 0 : index
    %220 = vector.load %arg10[%c1_171, %c0_172, %c0_173] : memref<2x4x256xf32, #tpu.memory_space<vmem>>, vector<1x4x256xf32>
    %221 = vector.shape_cast %220 : vector<1x4x256xf32> to vector<4x256xf32>
    %222 = vector.shape_cast %219 : vector<4x256xf32> to vector<1x4x256xf32>
    tpu.vector_store %arg10[%c1_171, %c0_172, %c0_173], %222 {strides = array<i32>} : memref<2x4x256xf32, #tpu.memory_space<vmem>>, vector<1x4x256xf32>,
    %c1_174 = arith.constant 1 : index
    %c0_175 = arith.constant 0 : index
    %c0_176 = arith.constant 0 : index
    %223 = vector.load %arg3[%c1_174, %c0_175, %c0_176] : memref<2x4x256xf32, #tpu.memory_space<vmem>>, vector<1x4x256xf32>
    %224 = vector.shape_cast %223 : vector<1x4x256xf32> to vector<4x256xf32>
    %225 = arith.mulf %219, %224 : vector<4x256xf32>
    %226 = vector.shape_cast %225 : vector<4x256xf32> to vector<1x4x256xf32>
    %cst_177 = arith.constant dense<0.000000e+00> : vector<1xf32>
    %227 = vector.multi_reduction <add>, %226, %cst_177 [1, 2] : vector<1x4x256xf32> to vector<1xf32>
    %228 = vector.shape_cast %227 : vector<1xf32> to vector<1x1x1xf32>
    %229 = vector.extract %228[0, 0, 0] : f32 from vector<1x1x1xf32>
    %cst_178 = arith.constant 5.000000e-01 : f32
    %230 = arith.mulf %cst_178, %229 : f32
    %c1_179 = arith.constant 1 : index
    %c0_180 = arith.constant 0 : index
    %231 = memref.load %arg11[%c1_179, %c0_180] : memref<2x1xf32, #tpu.memory_space<smem>>
    memref.store %230, %arg11[%c1_179, %c0_180] : memref<2x1xf32, #tpu.memory_space<smem>>
    return
  }
  func.func @transform_0(%arg0: i32) -> (i32, i32, i32) {
    %c0_i32 = arith.constant 0 : i32
    %c0_i32_0 = arith.constant 0 : i32
    %c0_i32_1 = arith.constant 0 : i32
    return %arg0, %c0_i32, %c0_i32_0 : i32, i32, i32
  }
  func.func @transform_1(%arg0: i32) -> (i32, i32) {
    %c0_i32 = arith.constant 0 : i32
    %c0_i32_0 = arith.constant 0 : i32
    return %arg0, %c0_i32 : i32, i32
  }
  func.func @transform_2(%arg0: i32) -> (i32, i32, i32) {
    %c0_i32 = arith.constant 0 : i32
    %c0_i32_0 = arith.constant 0 : i32
    %c0_i32_1 = arith.constant 0 : i32
    return %arg0, %c0_i32, %c0_i32_0 : i32, i32, i32
  }
  func.func @transform_3(%arg0: i32) -> (i32, i32) {
    %c0_i32 = arith.constant 0 : i32
    %c0_i32_0 = arith.constant 0 : i32
    %c0_i32_1 = arith.constant 0 : i32
    return %c0_i32, %c0_i32_0 : i32, i32
  }
  func.func @transform_4(%arg0: i32) -> (i32, i32) {
    %c0_i32 = arith.constant 0 : i32
    %c0_i32_0 = arith.constant 0 : i32
    %c0_i32_1 = arith.constant 0 : i32
    return %c0_i32, %c0_i32_0 : i32, i32
  }
  func.func @transform_5(%arg0: i32) -> (i32, i32) {
    %c0_i32 = arith.constant 0 : i32
    %c0_i32_0 = arith.constant 0 : i32
    %c0_i32_1 = arith.constant 0 : i32
    return %c0_i32, %c0_i32_0 : i32, i32
  }
  func.func @transform_6(%arg0: i32) -> (i32, i32) {
    %c0_i32 = arith.constant 0 : i32
    %c0_i32_0 = arith.constant 0 : i32
    %c0_i32_1 = arith.constant 0 : i32
    return %c0_i32, %c0_i32_0 : i32, i32
  }
  func.func @transform_7(%arg0: i32) -> (i32, i32) {
    %c0_i32 = arith.constant 0 : i32
    %c0_i32_0 = arith.constant 0 : i32
    %c0_i32_1 = arith.constant 0 : i32
    return %c0_i32, %c0_i32_0 : i32, i32
  }
  func.func @transform_8(%arg0: i32) -> (i32, i32) {
    %c0_i32 = arith.constant 0 : i32
    %c0_i32_0 = arith.constant 0 : i32
    %c0_i32_1 = arith.constant 0 : i32
    return %c0_i32, %c0_i32_0 : i32, i32
  }
  func.func @transform_9(%arg0: i32) -> (i32, i32, i32) {
    %c0_i32 = arith.constant 0 : i32
    %c0_i32_0 = arith.constant 0 : i32
    %c0_i32_1 = arith.constant 0 : i32
    return %arg0, %c0_i32, %c0_i32_0 : i32, i32, i32
  }
  func.func @transform_10(%arg0: i32) -> (i32, i32) {
    %c0_i32 = arith.constant 0 : i32
    %c0_i32_0 = arith.constant 0 : i32
    return %arg0, %c0_i32 : i32, i32
  }
}

</mosaic_0001>

<llo_original>
// kernel: tpu_custom_call.1
$region0: #{tpu_custom_call.1}
  #allocation0 [shape = 'u32[]', space=smem, size = 0x4, offset = 0x4, fixed_abs, tag = 'smem constant byte address 0x4 - core index']
  #allocation1 [shape = 'u32[144,128]{1,0:T(1,128)}', space=vmem, size = 0x12000, scoped, tag = 'internal scratch']
  #allocation2 [shape = 'f32[16,1024]{1,0:T(8,128)}', space=vmem, size = 0x10000, scoped, tag = 'scratch operand']
  #allocation3 [shape = 'f32[72,512]{1,0:T(8,128)}', space=vmem, size = 0x24000, scoped, tag = 'scratch operand']
  #allocation4 [shape = 'f32[144,512]{1,0:T(8,128)}', space=vmem, size = 0x48000, scoped, tag = 'scratch operand']
  %s0 = inlined_call_operand.hbm [shape: f32[2,8,256], index: 0, kind: input, shape index: {}]
  %s1 = inlined_call_operand.hbm [shape: bf16[2,48], index: 1, kind: input, shape index: {}]
  %s2 = inlined_call_operand.vmem [shape: f32[2,4,256], index: 2, kind: input, shape index: {}]
  %s3 = inlined_call_operand.hbm [shape: f32[4,72], index: 3, kind: input, shape index: {}]
  %s4 = inlined_call_operand.vmem [shape: f32[4,1], index: 4, kind: input, shape index: {}]
  %s5 = inlined_call_operand.hbm [shape: bf16[48,1024], index: 5, kind: input, shape index: {}]
  %s6 = inlined_call_operand.vmem [shape: f32[1,1024], index: 6, kind: input, shape index: {}]
  %s7 = inlined_call_operand.vmem [shape: f32[4,144], index: 7, kind: input, shape index: {}]
  %s8 = inlined_call_operand.vmem [shape: f32[4,1], index: 8, kind: input, shape index: {}]
  %s9 = inlined_call_operand.hbm [shape: f32[2,4,256], index: 9, kind: output, shape index: {0}]
  %s10 = inlined_call_operand.vmem [shape: f32[2,1], index: 10, kind: output, shape index: {1}]
  %11 = xla_tuple %s9, %s10
  %s12 = sld [smem:[#allocation0]]
  $region70: #{tpu_custom_call.1} parent=0
    _
  %s14 = ssub.s32 1, %s12
  %s15 = scalar_select 0, %s14, %s12
  $region1: #{tpu_custom_call.1} parent=0
    #allocation5 [shape = 'u8[16384]{0}', space=vmem, size = 0x4000, scoped, tag = 'input window, operand 0, single buffered']
    #allocation6 [shape = 's32[1]{0}', space=sflag, size = 0x4, scoped, tag = 'scoped memory for tpu_custom_call.1']
    #allocation7 [shape = 's32[1]{0}', space=sflag, size = 0x4, scoped, tag = 'scoped memory for tpu_custom_call.1']
    #allocation8 [shape = 's32[1]{0}', space=sflag, size = 0x4, scoped, tag = 'scoped memory for tpu_custom_call.1']
    #allocation9 [shape = 'u8[512]{0}', space=vmem, size = 0x400, scoped, tag = 'input window, operand 1, single buffered']
    #allocation10 [shape = 's32[1]{0}', space=sflag, size = 0x4, scoped, tag = 'scoped memory for tpu_custom_call.1']
    #allocation11 [shape = 'u8[2048]{0}', space=vmem, size = 0x800, scoped, tag = 'input window, operand 3, single buffered']
    #allocation12 [shape = 'u8[98304]{0}', space=vmem, size = 0x18000, scoped, tag = 'input window, operand 5, single buffered']
    #allocation13 [shape = 's32[1]{0}', space=sflag, size = 0x4, scoped, tag = 'scoped memory for tpu_custom_call.1']
    #allocation14 [shape = 'u8[8192]{0}', space=vmem, size = 0x2000, scoped, tag = 'output window, operand 0, single buffered']
    #allocation15 [shape = 'u8[1024]{0}', space=smem, size = 0x400, scoped, tag = 'output window, operand 1, single buffered']
    %16 = vsyncpa [#allocation6], 0
    %17 = vsyncpa [#allocation10], 0
    %18 = vsyncpa [#allocation13], 0
    %19 = vsyncpa [#allocation7], 0
    %20 = vsyncpa [#allocation8], 0
    // Predicated region
    $region2: #{tpu_custom_call.1} parent=1 // pred_check
      _
    $region3: #{tpu_custom_call.1} parent=1 // pred_check_branch
      %22 = sbr.rel (0) target = $region5
    $region4: #{tpu_custom_call.1} parent=1 // pred_region
      %s24 = ssub.s32 512, 512
      %25 = vsyncadd [#allocation6], %s24
      %s26 = sshll.u32 [#allocation5], 4
      %s27 = int_to_ptr.vmem [resolvable:$true] %s26
      %32 = dma.hbm_to_vmem [thread:$0]  %s0, 512, %s27, [#allocation6], 256, 256, 16
    $region5: #{tpu_custom_call.1} parent=1 // pred_fallthru
      _
    // Predicated region
    $region6: #{tpu_custom_call.1} parent=1 // pred_check
      _
    $region7: #{tpu_custom_call.1} parent=1 // pred_check_branch
      %34 = sbr.rel (0) target = $region9
    $region8: #{tpu_custom_call.1} parent=1 // pred_region
      %s36 = ssub.s32 16, 16
      %37 = vsyncadd [#allocation10], %s36
      %s39 = sshll.u32 [#allocation9], 4
      %s40 = int_to_ptr.vmem [resolvable:$true] %s39
      %42 = dma.hbm_to_vmem [thread:$0]  %s1, 16, %s40, [#allocation10]
    $region9: #{tpu_custom_call.1} parent=1 // pred_fallthru
      _
    // Predicated region
    $region10: #{tpu_custom_call.1} parent=1 // pred_check
      _
    $region11: #{tpu_custom_call.1} parent=1 // pred_check_branch
      %44 = sbr.rel (0) target = $region13
    $region12: #{tpu_custom_call.1} parent=1 // pred_region
      _
    $region13: #{tpu_custom_call.1} parent=1 // pred_fallthru
      _
    // Predicated region
    $region14: #{tpu_custom_call.1} parent=1 // pred_check
      _
    $region15: #{tpu_custom_call.1} parent=1 // pred_check_branch
      %46 = sbr.rel (0) target = $region17
    $region16: #{tpu_custom_call.1} parent=1 // pred_region
      %s48 = ssub.s32 64, 64
      %49 = vsyncadd [#allocation10], %s48
      %s51 = sshll.u32 [#allocation11], 4
      %s52 = int_to_ptr.vmem [resolvable:$true] %s51
      %54 = dma.hbm_to_vmem [thread:$0]  %s3, 64, %s52, [#allocation10]
    $region17: #{tpu_custom_call.1} parent=1 // pred_fallthru
      _
    // Predicated region
    $region18: #{tpu_custom_call.1} parent=1 // pred_check
      _
    $region19: #{tpu_custom_call.1} parent=1 // pred_check_branch
      %56 = sbr.rel (0) target = $region21
    $region20: #{tpu_custom_call.1} parent=1 // pred_region
      _
    $region21: #{tpu_custom_call.1} parent=1 // pred_fallthru
      _
    // Predicated region
    $region22: #{tpu_custom_call.1} parent=1 // pred_check
      _
    $region23: #{tpu_custom_call.1} parent=1 // pred_check_branch
      %58 = sbr.rel (0) target = $region25
    $region24: #{tpu_custom_call.1} parent=1 // pred_region
      %s60 = ssub.s32 3072, 3072
      %61 = vsyncadd [#allocation13], %s60
      %s62 = sshll.u32 [#allocation12], 4
      %s63 = int_to_ptr.vmem [resolvable:$true] %s62
      %68 = dma.hbm_to_vmem [thread:$0]  %s5, 3072, %s63, [#allocation13], 512, 512, 32
    $region25: #{tpu_custom_call.1} parent=1 // pred_fallthru
      _
    // Predicated region
    $region26: #{tpu_custom_call.1} parent=1 // pred_check
      _
    $region27: #{tpu_custom_call.1} parent=1 // pred_check_branch
      %70 = sbr.rel (0) target = $region29
    $region28: #{tpu_custom_call.1} parent=1 // pred_region
      _
    $region29: #{tpu_custom_call.1} parent=1 // pred_fallthru
      _
    // Predicated region
    $region30: #{tpu_custom_call.1} parent=1 // pred_check
      _
    $region31: #{tpu_custom_call.1} parent=1 // pred_check_branch
      %72 = sbr.rel (0) target = $region33
    $region32: #{tpu_custom_call.1} parent=1 // pred_region
      _
    $region33: #{tpu_custom_call.1} parent=1 // pred_fallthru
      _
    // Predicated region
    $region34: #{tpu_custom_call.1} parent=1 // pred_check
      _
    $region35: #{tpu_custom_call.1} parent=1 // pred_check_branch
      %74 = sbr.rel (0) target = $region37
    $region36: #{tpu_custom_call.1} parent=1 // pred_region
      _
    $region37: #{tpu_custom_call.1} parent=1 // pred_fallthru
      _
    // Predicated region
    $region38: #{tpu_custom_call.1} parent=1 // pred_check
      _
    $region39: #{tpu_custom_call.1} parent=1 // pred_check_branch
      %76 = sbr.rel (0) target = $region41
    $region40: #{tpu_custom_call.1} parent=1 // pred_region
      %77 = dma.done [#allocation6], 512
    $region41: #{tpu_custom_call.1} parent=1 // pred_fallthru
      _
    // Predicated region
    $region42: #{tpu_custom_call.1} parent=1 // pred_check
      _
    $region43: #{tpu_custom_call.1} parent=1 // pred_check_branch
      %79 = sbr.rel (0) target = $region45
    $region44: #{tpu_custom_call.1} parent=1 // pred_region
      %80 = dma.done [#allocation10], 16
    $region45: #{tpu_custom_call.1} parent=1 // pred_fallthru
      _
    // Predicated region
    $region46: #{tpu_custom_call.1} parent=1 // pred_check
      _
    $region47: #{tpu_custom_call.1} parent=1 // pred_check_branch
      %82 = sbr.rel (0) target = $region49
    $region48: #{tpu_custom_call.1} parent=1 // pred_region
      %83 = dma.done [#allocation10], 64
    $region49: #{tpu_custom_call.1} parent=1 // pred_fallthru
      _
    // Predicated region
    $region50: #{tpu_custom_call.1} parent=1 // pred_check
      _
    $region51: #{tpu_custom_call.1} parent=1 // pred_check_branch
      %85 = sbr.rel (0) target = $region53
    $region52: #{tpu_custom_call.1} parent=1 // pred_region
      %86 = dma.done [#allocation13], 3072
    $region53: #{tpu_custom_call.1} parent=1 // pred_fallthru
      _
    %88 = vst [vmem:[#allocation2] sm:$0xff] 0.0
    %89 = vst [vmem:[#allocation2 + $0x40] sm:$0xff] 0.0
    %90 = vst [vmem:[#allocation2 + $0x18] sm:$0xff] 0.0
    %91 = vst [vmem:[#allocation2 + $0x58] sm:$0xff] 0.0
    %92 = vst [vmem:[#allocation2 + $0x20] sm:$0xff] 0.0
    %93 = vst [vmem:[#allocation2 + $0x60] sm:$0xff] 0.0
    %94 = vst [vmem:[#allocation2 + $0x38] sm:$0xff] 0.0
    %95 = vst [vmem:[#allocation2 + $0x78] sm:$0xff] 0.0
    %v96 = vld [vmem:[#allocation5] sm:$0xff]
    %v97 = vld [vmem:[#allocation5 + $0x8] sm:$0xff]
    %98 = vst [vmem:[#allocation2 + $0x8] sm:$0xff] %v96
    %99 = vst [vmem:[#allocation2 + $0x10] sm:$0xff] %v97
    %s100 = scalar_lea.vmem [#allocation5], 16
    %v101 = vld [vmem:[%s100] sm:$0xff]
    %v102 = vld [vmem:[%s100 + $0x8] sm:$0xff]
    %103 = vst [vmem:[#allocation2 + $0x28] sm:$0xff] %v101
    %104 = vst [vmem:[#allocation2 + $0x30] sm:$0xff] %v102
    %v105 = vlaneseq
    %v106 = vand.u32 %v105, 127
    %v107 = vadd.s32 %v106, 128
    %vm108 = vcmp.lt.s32.totalorder %v106, 0
    %v109 = vsub.s32 0, %v106
    %v110 = vsel %vm108, %v109, %v106
    %v111 = vshrl.u32 %v110, 4
    %v112 = vand.u32 %v110, 15
    %v113 = vsub.s32 0, %v112
    %v114 = vsel %vm108, %v113, %v112
    %vm115 = vcmp.lt.s32.totalorder %v107, 0
    %v116 = vsub.s32 0, %v107
    %v117 = vsel %vm115, %v116, %v107
    %v118 = vshrl.u32 %v117, 4
    %v119 = vand.u32 %v117, 15
    %v120 = vsub.s32 0, %v119
    %v121 = vsel %vm115, %v120, %v119
    %vm122 = vcmp.ne.s32.totalorder %v114, 0
    %vm123 = vcmp.ne.s32.totalorder %v121, 0
    %vm124 = vcmp.lt.s32.totalorder %v114, 0
    %vm125 = vcmp.lt.s32.totalorder %v121, 0
    %vm126 = vmand %vm124, %vm122
    %vm127 = vmand %vm125, %vm123
    %v128 = vadd.s32 %v114, 16
    %v129 = vadd.s32 %v121, 16
    %v130 = vsel %vm126, %v128, %v114
    %v131 = vsel %vm127, %v129, %v121
    %v132 = vadd.s32 %v130, 4294967295
    %v133 = vadd.s32 %v131, 4294967295
    %vm134 = vcmp.ge.s32.totalorder %v132, 0
    %vm135 = vcmp.ge.s32.totalorder %v133, 0
    %vm136 = vcmp.lt.s32.totalorder %v132, 16
    %vm137 = vcmp.lt.s32.totalorder %v133, 16
    %vm138 = vmand %vm134, %vm136
    %vm139 = vmand %vm135, %vm137
    %v140 = vsel %vm138, 1, 0
    %v141 = vsel %vm139, 1, 0
    %v142 = vcvt.s32.f32 %v140
    %v143 = vcvt.s32.f32 %v141
    %v144 = vadd.s32 %v130, 1
    %v145 = vadd.s32 %v131, 1
    %vm146 = vcmp.ge.s32.totalorder %v144, 0
    %vm147 = vcmp.ge.s32.totalorder %v145, 0
    %vm148 = vcmp.lt.s32.totalorder %v144, 16
    %vm149 = vcmp.lt.s32.totalorder %v145, 16
    %vm150 = vmand %vm146, %vm148
    %vm151 = vmand %vm147, %vm149
    %v152 = vsel %vm150, 1, 0
    %v153 = vsel %vm151, 1, 0
    %v154 = vcvt.s32.f32 %v152
    %v155 = vcvt.s32.f32 %v153
    %v156 = vld [vmem:[#allocation2] sm:$0xff]
    %v157 = vld [vmem:[#allocation2 + $0x8] sm:$0xff]
    %v158 = vld [vmem:[#allocation2 + $0x10] sm:$0xff]
    %162 = vrot.lane.b32.xlu0 %v156, 16
    %v163 = vpop.permute.xlu0 %162
    %164 = vrot.lane.b32.xlu0 %v157, 16
    %v165 = vpop.permute.xlu0 %164
    %166 = vrot.lane.b32.xlu0 %v158, 16
    %v167 = vpop.permute.xlu0 %166
    %vm168 = vcmask 130048
    %v169 = vsel %vm168, %v163, %v165
    %v170 = vsel %vm168, %v165, %v167
    %173 = vrot.lane.b32.xlu0 %v169, 1
    %v174 = vpop.permute.xlu0 %173
    %175 = vrot.lane.b32.xlu0 %v170, 1
    %v176 = vpop.permute.xlu0 %175
    %vm177 = vcmp.lt.s32.totalorder %v106, 1
    %v178 = vsel %vm177, %v174, %v176
    %v179 = vsel %vm177, %v176, %v174
    %v180 = vmul.f32 %v179, %v142
    %v181 = vmul.f32 %v178, %v143
    %182 = vst [vmem:[#allocation3] sm:$0xff] %v180
    %183 = vst [vmem:[#allocation3 + $0x8] sm:$0xff] %v181
    %184 = vst [vmem:[#allocation3 + $0x20] sm:$0xff] %v169
    %185 = vst [vmem:[#allocation3 + $0x28] sm:$0xff] %v170
    %186 = vrot.lane.b32.xlu0 %v169, 127
    %v187 = vpop.permute.xlu0 %186
    %188 = vrot.lane.b32.xlu0 %v170, 127
    %v189 = vpop.permute.xlu0 %188
    %vm190 = vcmp.lt.s32.totalorder %v106, 127
    %v191 = vsel %vm190, %v187, %v189
    %v192 = vsel %vm190, %v189, %v187
    %v193 = vmul.f32 %v191, %v154
    %v194 = vmul.f32 %v192, %v155
    %195 = vst [vmem:[#allocation3 + $0x40] sm:$0xff] %v193
    %196 = vst [vmem:[#allocation3 + $0x48] sm:$0xff] %v194
    %v197 = vld [vmem:[#allocation2 + $0x20] sm:$0xff]
    %v198 = vld [vmem:[#allocation2 + $0x28] sm:$0xff]
    %v199 = vld [vmem:[#allocation2 + $0x30] sm:$0xff]
    %203 = vrot.lane.b32.xlu0 %v197, 16
    %v204 = vpop.permute.xlu0 %203
    %205 = vrot.lane.b32.xlu0 %v198, 16
    %v206 = vpop.permute.xlu0 %205
    %207 = vrot.lane.b32.xlu0 %v199, 16
    %v208 = vpop.permute.xlu0 %207
    %v209 = vsel %vm168, %v204, %v206
    %v210 = vsel %vm168, %v206, %v208
    %213 = vrot.lane.b32.xlu0 %v209, 1
    %v214 = vpop.permute.xlu0 %213
    %215 = vrot.lane.b32.xlu0 %v210, 1
    %v216 = vpop.permute.xlu0 %215
    %v217 = vsel %vm177, %v214, %v216
    %v218 = vsel %vm177, %v216, %v214
    %v219 = vmul.f32 %v218, %v142
    %v220 = vmul.f32 %v217, %v143
    %221 = vst [vmem:[#allocation3 + $0x10] sm:$0xff] %v219
    %222 = vst [vmem:[#allocation3 + $0x18] sm:$0xff] %v220
    %223 = vst [vmem:[#allocation3 + $0x30] sm:$0xff] %v209
    %224 = vst [vmem:[#allocation3 + $0x38] sm:$0xff] %v210
    %225 = vrot.lane.b32.xlu0 %v209, 127
    %v226 = vpop.permute.xlu0 %225
    %227 = vrot.lane.b32.xlu0 %v210, 127
    %v228 = vpop.permute.xlu0 %227
    %v229 = vsel %vm190, %v226, %v228
    %v230 = vsel %vm190, %v228, %v226
    %v231 = vmul.f32 %v229, %v154
    %v232 = vmul.f32 %v230, %v155
    %233 = vst [vmem:[#allocation3 + $0x50] sm:$0xff] %v231
    %234 = vst [vmem:[#allocation3 + $0x58] sm:$0xff] %v232
    %v235 = vld [vmem:[#allocation2 + $0x8] sm:$0xff]
    %v236 = vld [vmem:[#allocation2 + $0x10] sm:$0xff]
    %237 = vrot.lane.b32.xlu0 %v235, 1
    %v238 = vpop.permute.xlu0 %237
    %239 = vrot.lane.b32.xlu0 %v236, 1
    %v240 = vpop.permute.xlu0 %239
    %v241 = vsel %vm177, %v238, %v240
    %v242 = vsel %vm177, %v240, %v238
    %v243 = vmul.f32 %v242, %v142
    %v244 = vmul.f32 %v241, %v143
    %245 = vst [vmem:[#allocation3 + $0x60] sm:$0xff] %v243
    %246 = vst [vmem:[#allocation3 + $0x68] sm:$0xff] %v244
    %247 = vst [vmem:[#allocation3 + $0x80] sm:$0xff] %v235
    %248 = vst [vmem:[#allocation3 + $0x88] sm:$0xff] %v236
    %249 = vrot.lane.b32.xlu0 %v235, 127
    %v250 = vpop.permute.xlu0 %249
    %251 = vrot.lane.b32.xlu0 %v236, 127
    %v252 = vpop.permute.xlu0 %251
    %v253 = vsel %vm190, %v250, %v252
    %v254 = vsel %vm190, %v252, %v250
    %v255 = vmul.f32 %v253, %v154
    %v256 = vmul.f32 %v254, %v155
    %257 = vst [vmem:[#allocation3 + $0xa0] sm:$0xff] %v255
    %258 = vst [vmem:[#allocation3 + $0xa8] sm:$0xff] %v256
    %v259 = vld [vmem:[#allocation2 + $0x28] sm:$0xff]
    %v260 = vld [vmem:[#allocation2 + $0x30] sm:$0xff]
    %261 = vrot.lane.b32.xlu0 %v259, 1
    %v262 = vpop.permute.xlu0 %261
    %263 = vrot.lane.b32.xlu0 %v260, 1
    %v264 = vpop.permute.xlu0 %263
    %v265 = vsel %vm177, %v262, %v264
    %v266 = vsel %vm177, %v264, %v262
    %v267 = vmul.f32 %v266, %v142
    %v268 = vmul.f32 %v265, %v143
    %269 = vst [vmem:[#allocation3 + $0x70] sm:$0xff] %v267
    %270 = vst [vmem:[#allocation3 + $0x78] sm:$0xff] %v268
    %271 = vst [vmem:[#allocation3 + $0x90] sm:$0xff] %v259
    %272 = vst [vmem:[#allocation3 + $0x98] sm:$0xff] %v260
    %273 = vrot.lane.b32.xlu0 %v259, 127
    %v274 = vpop.permute.xlu0 %273
    %275 = vrot.lane.b32.xlu0 %v260, 127
    %v276 = vpop.permute.xlu0 %275
    %v277 = vsel %vm190, %v274, %v276
    %v278 = vsel %vm190, %v276, %v274
    %v279 = vmul.f32 %v277, %v154
    %v280 = vmul.f32 %v278, %v155
    %281 = vst [vmem:[#allocation3 + $0xb0] sm:$0xff] %v279
    %282 = vst [vmem:[#allocation3 + $0xb8] sm:$0xff] %v280
    %v283 = vld [vmem:[#allocation2 + $0x8] sm:$0xff]
    %v284 = vld [vmem:[#allocation2 + $0x10] sm:$0xff]
    %v285 = vld [vmem:[#allocation2 + $0x18] sm:$0xff]
    %289 = vrot.lane.b32.xlu0 %v283, 112
    %v290 = vpop.permute.xlu0 %289
    %291 = vrot.lane.b32.xlu0 %v284, 112
    %v292 = vpop.permute.xlu0 %291
    %293 = vrot.lane.b32.xlu0 %v285, 112
    %v294 = vpop.permute.xlu0 %293
    %vm295 = vcmask 916480
    %v296 = vsel %vm295, %v290, %v292
    %v297 = vsel %vm295, %v292, %v294
    %300 = vrot.lane.b32.xlu0 %v296, 1
    %v301 = vpop.permute.xlu0 %300
    %302 = vrot.lane.b32.xlu0 %v297, 1
    %v303 = vpop.permute.xlu0 %302
    %v304 = vsel %vm177, %v301, %v303
    %v305 = vsel %vm177, %v303, %v301
    %v306 = vmul.f32 %v305, %v142
    %v307 = vmul.f32 %v304, %v143
    %308 = vst [vmem:[#allocation3 + $0xc0] sm:$0xff] %v306
    %309 = vst [vmem:[#allocation3 + $0xc8] sm:$0xff] %v307
    %310 = vst [vmem:[#allocation3 + $0xe0] sm:$0xff] %v296
    %311 = vst [vmem:[#allocation3 + $0xe8] sm:$0xff] %v297
    %312 = vrot.lane.b32.xlu0 %v296, 127
    %v313 = vpop.permute.xlu0 %312
    %314 = vrot.lane.b32.xlu0 %v297, 127
    %v315 = vpop.permute.xlu0 %314
    %v316 = vsel %vm190, %v313, %v315
    %v317 = vsel %vm190, %v315, %v313
    %v318 = vmul.f32 %v316, %v154
    %v319 = vmul.f32 %v317, %v155
    %320 = vst [vmem:[#allocation3 + $0x100] sm:$0xff] %v318
    %321 = vst [vmem:[#allocation3 + $0x108] sm:$0xff] %v319
    %v322 = vld [vmem:[#allocation2 + $0x28] sm:$0xff]
    %v323 = vld [vmem:[#allocation2 + $0x30] sm:$0xff]
    %v324 = vld [vmem:[#allocation2 + $0x38] sm:$0xff]
    %328 = vrot.lane.b32.xlu0 %v322, 112
    %v329 = vpop.permute.xlu0 %328
    %330 = vrot.lane.b32.xlu0 %v323, 112
    %v331 = vpop.permute.xlu0 %330
    %332 = vrot.lane.b32.xlu0 %v324, 112
    %v333 = vpop.permute.xlu0 %332
    %v334 = vsel %vm295, %v329, %v331
    %v335 = vsel %vm295, %v331, %v333
    %338 = vrot.lane.b32.xlu0 %v334, 1
    %v339 = vpop.permute.xlu0 %338
    %340 = vrot.lane.b32.xlu0 %v335, 1
    %v341 = vpop.permute.xlu0 %340
    %v342 = vsel %vm177, %v339, %v341
    %v343 = vsel %vm177, %v341, %v339
    %v344 = vmul.f32 %v343, %v142
    %v345 = vmul.f32 %v342, %v143
    %346 = vst [vmem:[#allocation3 + $0xd0] sm:$0xff] %v344
    %347 = vst [vmem:[#allocation3 + $0xd8] sm:$0xff] %v345
    %348 = vst [vmem:[#allocation3 + $0xf0] sm:$0xff] %v334
    %349 = vst [vmem:[#allocation3 + $0xf8] sm:$0xff] %v335
    %350 = vrot.lane.b32.xlu0 %v334, 127
    %v351 = vpop.permute.xlu0 %350
    %352 = vrot.lane.b32.xlu0 %v335, 127
    %v353 = vpop.permute.xlu0 %352
    %v354 = vsel %vm190, %v351, %v353
    %v355 = vsel %vm190, %v353, %v351
    %v356 = vmul.f32 %v354, %v154
    %v357 = vmul.f32 %v355, %v155
    %358 = vst [vmem:[#allocation3 + $0x110] sm:$0xff] %v356
    %359 = vst [vmem:[#allocation3 + $0x118] sm:$0xff] %v357
    %v360 = vld [vmem:[#allocation11] sm:$0xf]
    %v361 = vld [vmem:[#allocation3] sm:$0xff]
    %v362 = vld [vmem:[#allocation3 + $0x8] sm:$0xff]
    %v363 = vld [vmem:[#allocation3 + $0x10] sm:$0xff]
    %v364 = vld [vmem:[#allocation3 + $0x18] sm:$0xff]
    %v365 = vld [vmem:[#allocation3 + $0x20] sm:$0xff]
    %v366 = vld [vmem:[#allocation3 + $0x28] sm:$0xff]
    %v367 = vld [vmem:[#allocation3 + $0x30] sm:$0xff]
    %v368 = vld [vmem:[#allocation3 + $0x38] sm:$0xff]
    %v369 = vld [vmem:[#allocation3 + $0x40] sm:$0xff]
    %v370 = vld [vmem:[#allocation3 + $0x48] sm:$0xff]
    %v371 = vld [vmem:[#allocation3 + $0x50] sm:$0xff]
    %v372 = vld [vmem:[#allocation3 + $0x58] sm:$0xff]
    %v373 = vld [vmem:[#allocation3 + $0x60] sm:$0xff]
    %v374 = vld [vmem:[#allocation3 + $0x68] sm:$0xff]
    %v375 = vld [vmem:[#allocation3 + $0x70] sm:$0xff]
    %v376 = vld [vmem:[#allocation3 + $0x78] sm:$0xff]
    %v377 = vld [vmem:[#allocation3 + $0x80] sm:$0xff]
    %v378 = vld [vmem:[#allocation3 + $0x88] sm:$0xff]
    %v379 = vld [vmem:[#allocation3 + $0x90] sm:$0xff]
    %v380 = vld [vmem:[#allocation3 + $0x98] sm:$0xff]
    %v381 = vld [vmem:[#allocation3 + $0xa0] sm:$0xff]
    %v382 = vld [vmem:[#allocation3 + $0xa8] sm:$0xff]
    %v383 = vld [vmem:[#allocation3 + $0xb0] sm:$0xff]
    %v384 = vld [vmem:[#allocation3 + $0xb8] sm:$0xff]
    %v385 = vld [vmem:[#allocation3 + $0xc0] sm:$0xff]
    %v386 = vld [vmem:[#allocation3 + $0xc8] sm:$0xff]
    %v387 = vld [vmem:[#allocation3 + $0xd0] sm:$0xff]
    %v388 = vld [vmem:[#allocation3 + $0xd8] sm:$0xff]
    %v389 = vld [vmem:[#allocation3 + $0xe0] sm:$0xff]
    %v390 = vld [vmem:[#allocation3 + $0xe8] sm:$0xff]
    %v391 = vld [vmem:[#allocation3 + $0xf0] sm:$0xff]
    %v392 = vld [vmem:[#allocation3 + $0xf8] sm:$0xff]
    %v393 = vld [vmem:[#allocation3 + $0x100] sm:$0xff]
    %v394 = vld [vmem:[#allocation3 + $0x108] sm:$0xff]
    %v395 = vld [vmem:[#allocation3 + $0x110] sm:$0xff]
    %v396 = vld [vmem:[#allocation3 + $0x118] sm:$0xff]
    %v397 = vld [vmem:[%s4] sm:$0xf]
    %399 = vset.pattern.permute.xlu0 0
    %400 = vperm.xlu0 %399, %v397
    %v401 = vpop.permute.xlu0 %400
    %vm403 = vcmask 588800
    %v405 = vsel %vm403, %v360, 0
    %407 = vmatprep.subr.mxu0 %v362
    %408 = vmatpush1.msra.mxu0 %v361
    %409 = vmatprep.subr.mxu0 %v366
    %410 = vmatpush1.msra.mxu0 %v365
    %411 = vmatprep.subr.mxu0 %v370
    %412 = vmatpush1.msra.mxu0 %v369
    %413 = vmatprep.subr.mxu0 %v374
    %414 = vmatpush1.msra.mxu0 %v373
    %415 = vmatprep.subr.mxu0 %v378
    %416 = vmatpush1.msra.mxu0 %v377
    %417 = vmatprep.subr.mxu0 %v382
    %418 = vmatpush1.msra.mxu0 %v381
    %419 = vmatprep.subr.mxu0 %v386
    %420 = vmatpush1.msra.mxu0 %v385
    %421 = vmatprep.subr.mxu0 %v390
    %422 = vmatpush1.msra.mxu0 %v389
    %423 = vmatprep.subr.mxu0 %v394
    %424 = vmatpush1.msra.mxu0 %v393
    %425 = vmatprep.subr.mxu0 0.0
    %426 = vmatpush1.msra.mxu0 0.0
    %427 = vmatprep.subr.mxu0 0.0
    %428 = vmatpush1.msra.mxu0 0.0
    %429 = vmatprep.subr.mxu0 0.0
    %430 = vmatpush1.msra.mxu0 0.0
    %431 = vmatprep.subr.mxu0 0.0
    %432 = vmatpush1.msra.mxu0 0.0
    %433 = vmatprep.subr.mxu0 0.0
    %434 = vmatpush1.msra.mxu0 0.0
    %435 = vmatprep.subr.mxu0 0.0
    %436 = vmatpush1.msra.mxu0 0.0
    %437 = vmatprep.subr.mxu0 0.0
    %438 = vmatpush1.msra.mxu0 0.0
    %439 = vmatprep.subr.mxu0 0.0
    %440 = vmatpush1.msra.mxu0 0.0
    %441 = vmatprep.subr.mxu0 0.0
    %442 = vmatpush1.msra.mxu0 0.0
    %443 = vmatprep.subr.mxu0 0.0
    %444 = vmatpush1.msra.mxu0 0.0
    %445 = vmatprep.subr.mxu0 0.0
    %446 = vmatpush1.msra.mxu0 0.0
    %447 = vmatprep.subr.mxu0 0.0
    %448 = vmatpush1.msra.mxu0 0.0
    %449 = vmatprep.subr.mxu0 0.0
    %450 = vmatpush1.msra.mxu0 0.0
    %451 = vmatprep.subr.mxu0 0.0
    %452 = vmatpush1.msra.mxu0 0.0
    %453 = vmatprep.subr.mxu0 0.0
    %454 = vmatpush1.msra.mxu0 0.0
    %455 = vmatprep.subr.mxu0 0.0
    %456 = vmatpush1.msra.mxu0 0.0
    %457 = vmatprep.subr.mxu0 0.0
    %458 = vmatpush1.msra.mxu0 0.0
    %459 = vmatprep.subr.mxu0 0.0
    %460 = vmatpush1.msra.mxu0 0.0
    %461 = vmatprep.subr.mxu0 0.0
    %462 = vmatpush1.msra.mxu0 0.0
    %463 = vmatprep.subr.mxu0 0.0
    %464 = vmatpush1.msra.mxu0 0.0
    %465 = vmatprep.subr.mxu0 0.0
    %466 = vmatpush1.msra.mxu0 0.0
    %467 = vmatprep.subr.mxu0 0.0
    %468 = vmatpush1.msra.mxu0 0.0
    %469 = vmatprep.subr.mxu0 0.0
    %470 = vmatpush1.msra.mxu0 0.0
    %471 = vmatprep.mubr.f32.mxu0 0.0
    %472 = vmatmul.mubr.f32.gmra.mrb[0].mxu0 %v405
    %v473 = vpop.f32.mrb[0].mxu0
    %v474 = vadd.f32 %v401, %v473
    %v475 = vpop.f32.mrb[0].mxu0
    %v476 = vadd.f32 %v401, %v475
    %477 = vdwg.mxu0
    %478 = vmatprep.subr.mxu0 %v364
    %479 = vmatpush1.msra.mxu0 %v363
    %480 = vmatprep.subr.mxu0 %v368
    %481 = vmatpush1.msra.mxu0 %v367
    %482 = vmatprep.subr.mxu0 %v372
    %483 = vmatpush1.msra.mxu0 %v371
    %484 = vmatprep.subr.mxu0 %v376
    %485 = vmatpush1.msra.mxu0 %v375
    %486 = vmatprep.subr.mxu0 %v380
    %487 = vmatpush1.msra.mxu0 %v379
    %488 = vmatprep.subr.mxu0 %v384
    %489 = vmatpush1.msra.mxu0 %v383
    %490 = vmatprep.subr.mxu0 %v388
    %491 = vmatpush1.msra.mxu0 %v387
    %492 = vmatprep.subr.mxu0 %v392
    %493 = vmatpush1.msra.mxu0 %v391
    %494 = vmatprep.subr.mxu0 %v396
    %495 = vmatpush1.msra.mxu0 %v395
    %496 = vmatprep.subr.mxu0 0.0
    %497 = vmatpush1.msra.mxu0 0.0
    %498 = vmatprep.subr.mxu0 0.0
    %499 = vmatpush1.msra.mxu0 0.0
    %500 = vmatprep.subr.mxu0 0.0
    %501 = vmatpush1.msra.mxu0 0.0
    %502 = vmatprep.subr.mxu0 0.0
    %503 = vmatpush1.msra.mxu0 0.0
    %504 = vmatprep.subr.mxu0 0.0
    %505 = vmatpush1.msra.mxu0 0.0
    %506 = vmatprep.subr.mxu0 0.0
    %507 = vmatpush1.msra.mxu0 0.0
    %508 = vmatprep.subr.mxu0 0.0
    %509 = vmatpush1.msra.mxu0 0.0
    %510 = vmatprep.subr.mxu0 0.0
    %511 = vmatpush1.msra.mxu0 0.0
    %512 = vmatprep.subr.mxu0 0.0
    %513 = vmatpush1.msra.mxu0 0.0
    %514 = vmatprep.subr.mxu0 0.0
    %515 = vmatpush1.msra.mxu0 0.0
    %516 = vmatprep.subr.mxu0 0.0
    %517 = vmatpush1.msra.mxu0 0.0
    %518 = vmatprep.subr.mxu0 0.0
    %519 = vmatpush1.msra.mxu0 0.0
    %520 = vmatprep.subr.mxu0 0.0
    %521 = vmatpush1.msra.mxu0 0.0
    %522 = vmatprep.subr.mxu0 0.0
    %523 = vmatpush1.msra.mxu0 0.0
    %524 = vmatprep.subr.mxu0 0.0
    %525 = vmatpush1.msra.mxu0 0.0
    %526 = vmatprep.subr.mxu0 0.0
    %527 = vmatpush1.msra.mxu0 0.0
    %528 = vmatprep.subr.mxu0 0.0
    %529 = vmatpush1.msra.mxu0 0.0
    %530 = vmatprep.subr.mxu0 0.0
    %531 = vmatpush1.msra.mxu0 0.0
    %532 = vmatprep.subr.mxu0 0.0
    %533 = vmatpush1.msra.mxu0 0.0
    %534 = vmatprep.subr.mxu0 0.0
    %535 = vmatpush1.msra.mxu0 0.0
    %536 = vmatprep.subr.mxu0 0.0
    %537 = vmatpush1.msra.mxu0 0.0
    %538 = vmatprep.subr.mxu0 0.0
    %539 = vmatpush1.msra.mxu0 0.0
    %540 = vmatprep.subr.mxu0 0.0
    %541 = vmatpush1.msra.mxu0 0.0
    %542 = vmatprep.mubr.f32.mxu0 0.0
    %543 = vmatmul.mubr.f32.gmra.mrb[0].mxu0 %v405
    %v544 = vpop.f32.mrb[0].mxu0
    %v545 = vadd.f32 %v401, %v544
    %v546 = vpop.f32.mrb[0].mxu0
    %v547 = vadd.f32 %v401, %v546
    %548 = vdwg.mxu0
    %549 = vst [vmem:[#allocation2 + $0x48] sm:$0xf] %v474
    %550 = vst [vmem:[#allocation2 + $0x50] sm:$0xf] %v476
    %551 = vst [vmem:[#allocation2 + $0x68] sm:$0xf] %v545
    %552 = vst [vmem:[#allocation2 + $0x70] sm:$0xf] %v547
    %v553 = vld [vmem:[#allocation9] sm:$0x1]
    %v554 = vld [vmem:[#allocation12] sm:$0xff]
    %v555 = vld [vmem:[#allocation12 + $0x8] sm:$0xff]
    %v556 = vld [vmem:[#allocation12 + $0x10] sm:$0xff]
    %v557 = vld [vmem:[#allocation12 + $0x18] sm:$0xff]
    %v558 = vld [vmem:[#allocation12 + $0x20] sm:$0xff]
    %v559 = vld [vmem:[#allocation12 + $0x28] sm:$0xff]
    %v560 = vld [vmem:[#allocation12 + $0x30] sm:$0xff]
    %v561 = vld [vmem:[#allocation12 + $0x38] sm:$0xff]
    %v562 = vld [vmem:[#allocation12 + $0x40] sm:$0xff]
    %v563 = vld [vmem:[#allocation12 + $0x48] sm:$0xff]
    %v564 = vld [vmem:[#allocation12 + $0x50] sm:$0xff]
    %v565 = vld [vmem:[#allocation12 + $0x58] sm:$0xff]
    %v566 = vld [vmem:[#allocation12 + $0x60] sm:$0xff]
    %v567 = vld [vmem:[#allocation12 + $0x68] sm:$0xff]
    %v568 = vld [vmem:[#allocation12 + $0x70] sm:$0xff]
    %v569 = vld [vmem:[#allocation12 + $0x78] sm:$0xff]
    %v570 = vld [vmem:[#allocation12 + $0x80] sm:$0xff]
    %v571 = vld [vmem:[#allocation12 + $0x88] sm:$0xff]
    %v572 = vld [vmem:[#allocation12 + $0x90] sm:$0xff]
    %v573 = vld [vmem:[#allocation12 + $0x98] sm:$0xff]
    %v574 = vld [vmem:[#allocation12 + $0xa0] sm:$0xff]
    %v575 = vld [vmem:[#allocation12 + $0xa8] sm:$0xff]
    %v576 = vld [vmem:[#allocation12 + $0xb0] sm:$0xff]
    %v577 = vld [vmem:[#allocation12 + $0xb8] sm:$0xff]
    %v578 = vld [vmem:[%s6] sm:$0xff]
    %v580 = vlaneseq
    %v581 = vshrl.u32 %v580, 7
    %v582 = vsub.s32 0, %v581
    %v583 = vrot.slane %v578, %v582
    %v584 = vlaneseq
    %v585 = vshrl.u32 %v584, 7
    %v586 = vsub.s32 1, %v585
    %v587 = vrot.slane %v578, %v586
    %v588 = vlaneseq
    %v589 = vshrl.u32 %v588, 7
    %v590 = vsub.s32 2, %v589
    %v591 = vrot.slane %v578, %v590
    %v592 = vlaneseq
    %v593 = vshrl.u32 %v592, 7
    %v594 = vsub.s32 3, %v593
    %v595 = vrot.slane %v578, %v594
    %v596 = vlaneseq
    %v597 = vshrl.u32 %v596, 7
    %v598 = vsub.s32 4, %v597
    %v599 = vrot.slane %v578, %v598
    %v600 = vlaneseq
    %v601 = vshrl.u32 %v600, 7
    %v602 = vsub.s32 5, %v601
    %v603 = vrot.slane %v578, %v602
    %v604 = vlaneseq
    %v605 = vshrl.u32 %v604, 7
    %v606 = vsub.s32 6, %v605
    %v607 = vrot.slane %v578, %v606
    %v608 = vlaneseq
    %v609 = vshrl.u32 %v608, 7
    %v610 = vsub.s32 7, %v609
    %v611 = vrot.slane %v578, %v610
    %v644 = vunpack.c.l.b16 %v554
    %v645 = vunpack.c.h.b16 %v554
    %v646 = vunpack.c.l.b16 %v555
    %v647 = vunpack.c.h.b16 %v555
    %v648 = vunpack.c.l.b16 %v556
    %v649 = vunpack.c.h.b16 %v556
    %v650 = vunpack.c.l.b16 %v557
    %v651 = vunpack.c.h.b16 %v557
    %v652 = vunpack.c.l.b16 %v558
    %v653 = vunpack.c.h.b16 %v558
    %v654 = vunpack.c.l.b16 %v559
    %v655 = vunpack.c.h.b16 %v559
    %v656 = vunpack.c.l.b16 %v560
    %v657 = vunpack.c.h.b16 %v560
    %v658 = vunpack.c.l.b16 %v561
    %v659 = vunpack.c.h.b16 %v561
    %v660 = vunpack.c.l.b16 %v562
    %v661 = vunpack.c.h.b16 %v562
    %v662 = vunpack.c.l.b16 %v563
    %v663 = vunpack.c.h.b16 %v563
    %v664 = vunpack.c.l.b16 %v564
    %v665 = vunpack.c.h.b16 %v564
    %v666 = vunpack.c.l.b16 %v565
    %v667 = vunpack.c.h.b16 %v565
    %v668 = vunpack.c.l.b16 %v566
    %v669 = vunpack.c.h.b16 %v566
    %v670 = vunpack.c.l.b16 %v567
    %v671 = vunpack.c.h.b16 %v567
    %v672 = vunpack.c.l.b16 %v568
    %v673 = vunpack.c.h.b16 %v568
    %v674 = vunpack.c.l.b16 %v569
    %v675 = vunpack.c.h.b16 %v569
    %v676 = vunpack.c.l.b16 %v570
    %v677 = vunpack.c.h.b16 %v570
    %v678 = vunpack.c.l.b16 %v571
    %v679 = vunpack.c.h.b16 %v571
    %v680 = vunpack.c.l.b16 %v572
    %v681 = vunpack.c.h.b16 %v572
    %v682 = vunpack.c.l.b16 %v573
    %v683 = vunpack.c.h.b16 %v573
    %v684 = vunpack.c.l.b16 %v574
    %v685 = vunpack.c.h.b16 %v574
    %v686 = vunpack.c.l.b16 %v575
    %v687 = vunpack.c.h.b16 %v575
    %v688 = vunpack.c.l.b16 %v576
    %v689 = vunpack.c.h.b16 %v576
    %v690 = vunpack.c.l.b16 %v577
    %v691 = vunpack.c.h.b16 %v577
    %v692 = vpack.c.b16 %v652, %v644
    %v693 = vpack.c.b16 %v653, %v645
    %v694 = vpack.c.b16 %v654, %v646
    %v695 = vpack.c.b16 %v655, %v647
    %v696 = vpack.c.b16 %v656, %v648
    %v697 = vpack.c.b16 %v657, %v649
    %v698 = vpack.c.b16 %v658, %v650
    %v699 = vpack.c.b16 %v659, %v651
    %v700 = vpack.c.b16 %v668, %v660
    %v701 = vpack.c.b16 %v669, %v661
    %v702 = vpack.c.b16 %v670, %v662
    %v703 = vpack.c.b16 %v671, %v663
    %v704 = vpack.c.b16 %v672, %v664
    %v705 = vpack.c.b16 %v673, %v665
    %v706 = vpack.c.b16 %v674, %v666
    %v707 = vpack.c.b16 %v675, %v667
    %v708 = vpack.c.b16 %v684, %v676
    %v709 = vpack.c.b16 %v685, %v677
    %v710 = vpack.c.b16 %v686, %v678
    %v711 = vpack.c.b16 %v687, %v679
    %v712 = vpack.c.b16 %v688, %v680
    %v713 = vpack.c.b16 %v689, %v681
    %v714 = vpack.c.b16 %v690, %v682
    %v715 = vpack.c.b16 %v691, %v683
    %vm740 = vcmask 392192
    %v742 = vsel %vm740, %v553, 0
    %744 = vmatprep.subr.bf16.mxu0 %v693
    %745 = vmatpush1.bf16.msra.mxu0 %v692
    %746 = vmatprep.subr.bf16.mxu0 %v701
    %747 = vmatpush1.bf16.msra.mxu0 %v700
    %748 = vmatprep.subr.bf16.mxu0 %v709
    %749 = vmatpush1.bf16.msra.mxu0 %v708
    %750 = vmatprep.subr.bf16.mxu0 0
    %751 = vmatpush1.bf16.msra.mxu0 0
    %752 = vmatprep.subr.bf16.mxu0 0
    %753 = vmatpush1.bf16.msra.mxu0 0
    %754 = vmatprep.subr.bf16.mxu0 0
    %755 = vmatpush1.bf16.msra.mxu0 0
    %756 = vmatprep.subr.bf16.mxu0 0
    %757 = vmatpush1.bf16.msra.mxu0 0
    %758 = vmatprep.subr.bf16.mxu0 0
    %759 = vmatpush1.bf16.msra.mxu0 0
    %760 = vmatprep.subr.bf16.mxu0 0
    %761 = vmatpush1.bf16.msra.mxu0 0
    %762 = vmatprep.subr.bf16.mxu0 0
    %763 = vmatpush1.bf16.msra.mxu0 0
    %764 = vmatprep.subr.bf16.mxu0 0
    %765 = vmatpush1.bf16.msra.mxu0 0
    %766 = vmatprep.subr.bf16.mxu0 0
    %767 = vmatpush1.bf16.msra.mxu0 0
    %768 = vmatprep.subr.bf16.mxu0 0
    %769 = vmatpush1.bf16.msra.mxu0 0
    %770 = vmatprep.subr.bf16.mxu0 0
    %771 = vmatpush1.bf16.msra.mxu0 0
    %772 = vmatprep.subr.bf16.mxu0 0
    %773 = vmatpush1.bf16.msra.mxu0 0
    %774 = vmatprep.subr.bf16.mxu0 0
    %775 = vmatpush1.bf16.msra.mxu0 0
    %776 = vmatprep.mubr.bf16.mxu0 0
    %777 = vmatmul.mubr.bf16.gmra.mrb[0].mxu0 %v742
    %v778 = vpop.f32.mrb[0].mxu0
    %v779 = vadd.f32 %v583, %v778
    %v780 = vpop.f32.mrb[0].mxu0
    %v781 = vadd.f32 %v587, %v780
    %v782 = vpop.f32.mrb[0].mxu0
    %v783 = vpop.f32.mrb[0].mxu0
    %784 = vdwg.mxu0
    %785 = vmatprep.subr.bf16.mxu0 %v695
    %786 = vmatpush1.bf16.msra.mxu0 %v694
    %787 = vmatprep.subr.bf16.mxu0 %v703
    %788 = vmatpush1.bf16.msra.mxu0 %v702
    %789 = vmatprep.subr.bf16.mxu0 %v711
    %790 = vmatpush1.bf16.msra.mxu0 %v710
    %791 = vmatprep.subr.bf16.mxu0 0
    %792 = vmatpush1.bf16.msra.mxu0 0
    %793 = vmatprep.subr.bf16.mxu0 0
    %794 = vmatpush1.bf16.msra.mxu0 0
    %795 = vmatprep.subr.bf16.mxu0 0
    %796 = vmatpush1.bf16.msra.mxu0 0
    %797 = vmatprep.subr.bf16.mxu0 0
    %798 = vmatpush1.bf16.msra.mxu0 0
    %799 = vmatprep.subr.bf16.mxu0 0
    %800 = vmatpush1.bf16.msra.mxu0 0
    %801 = vmatprep.subr.bf16.mxu0 0
    %802 = vmatpush1.bf16.msra.mxu0 0
    %803 = vmatprep.subr.bf16.mxu0 0
    %804 = vmatpush1.bf16.msra.mxu0 0
    %805 = vmatprep.subr.bf16.mxu0 0
    %806 = vmatpush1.bf16.msra.mxu0 0
    %807 = vmatprep.subr.bf16.mxu0 0
    %808 = vmatpush1.bf16.msra.mxu0 0
    %809 = vmatprep.subr.bf16.mxu0 0
    %810 = vmatpush1.bf16.msra.mxu0 0
    %811 = vmatprep.subr.bf16.mxu0 0
    %812 = vmatpush1.bf16.msra.mxu0 0
    %813 = vmatprep.subr.bf16.mxu0 0
    %814 = vmatpush1.bf16.msra.mxu0 0
    %815 = vmatprep.subr.bf16.mxu0 0
    %816 = vmatpush1.bf16.msra.mxu0 0
    %817 = vmatprep.mubr.bf16.mxu0 0
    %818 = vmatmul.mubr.bf16.gmra.mrb[0].mxu0 %v742
    %v819 = vpop.f32.mrb[0].mxu0
    %v820 = vadd.f32 %v591, %v819
    %v821 = vpop.f32.mrb[0].mxu0
    %v822 = vadd.f32 %v595, %v821
    %v823 = vpop.f32.mrb[0].mxu0
    %v824 = vpop.f32.mrb[0].mxu0
    %825 = vdwg.mxu0
    %826 = vmatprep.subr.bf16.mxu0 %v697
    %827 = vmatpush1.bf16.msra.mxu0 %v696
    %828 = vmatprep.subr.bf16.mxu0 %v705
    %829 = vmatpush1.bf16.msra.mxu0 %v704
    %830 = vmatprep.subr.bf16.mxu0 %v713
    %831 = vmatpush1.bf16.msra.mxu0 %v712
    %832 = vmatprep.subr.bf16.mxu0 0
    %833 = vmatpush1.bf16.msra.mxu0 0
    %834 = vmatprep.subr.bf16.mxu0 0
    %835 = vmatpush1.bf16.msra.mxu0 0
    %836 = vmatprep.subr.bf16.mxu0 0
    %837 = vmatpush1.bf16.msra.mxu0 0
    %838 = vmatprep.subr.bf16.mxu0 0
    %839 = vmatpush1.bf16.msra.mxu0 0
    %840 = vmatprep.subr.bf16.mxu0 0
    %841 = vmatpush1.bf16.msra.mxu0 0
    %842 = vmatprep.subr.bf16.mxu0 0
    %843 = vmatpush1.bf16.msra.mxu0 0
    %844 = vmatprep.subr.bf16.mxu0 0
    %845 = vmatpush1.bf16.msra.mxu0 0
    %846 = vmatprep.subr.bf16.mxu0 0
    %847 = vmatpush1.bf16.msra.mxu0 0
    %848 = vmatprep.subr.bf16.mxu0 0
    %849 = vmatpush1.bf16.msra.mxu0 0
    %850 = vmatprep.subr.bf16.mxu0 0
    %851 = vmatpush1.bf16.msra.mxu0 0
    %852 = vmatprep.subr.bf16.mxu0 0
    %853 = vmatpush1.bf16.msra.mxu0 0
    %854 = vmatprep.subr.bf16.mxu0 0
    %855 = vmatpush1.bf16.msra.mxu0 0
    %856 = vmatprep.subr.bf16.mxu0 0
    %857 = vmatpush1.bf16.msra.mxu0 0
    %858 = vmatprep.mubr.bf16.mxu0 0
    %859 = vmatmul.mubr.bf16.gmra.mrb[0].mxu0 %v742
    %v860 = vpop.f32.mrb[0].mxu0
    %v861 = vadd.f32 %v599, %v860
    %v862 = vpop.f32.mrb[0].mxu0
    %v863 = vadd.f32 %v603, %v862
    %v864 = vpop.f32.mrb[0].mxu0
    %v865 = vpop.f32.mrb[0].mxu0
    %866 = vdwg.mxu0
    %867 = vmatprep.subr.bf16.mxu0 %v699
    %868 = vmatpush1.bf16.msra.mxu0 %v698
    %869 = vmatprep.subr.bf16.mxu0 %v707
    %870 = vmatpush1.bf16.msra.mxu0 %v706
    %871 = vmatprep.subr.bf16.mxu0 %v715
    %872 = vmatpush1.bf16.msra.mxu0 %v714
    %873 = vmatprep.subr.bf16.mxu0 0
    %874 = vmatpush1.bf16.msra.mxu0 0
    %875 = vmatprep.subr.bf16.mxu0 0
    %876 = vmatpush1.bf16.msra.mxu0 0
    %877 = vmatprep.subr.bf16.mxu0 0
    %878 = vmatpush1.bf16.msra.mxu0 0
    %879 = vmatprep.subr.bf16.mxu0 0
    %880 = vmatpush1.bf16.msra.mxu0 0
    %881 = vmatprep.subr.bf16.mxu0 0
    %882 = vmatpush1.bf16.msra.mxu0 0
    %883 = vmatprep.subr.bf16.mxu0 0
    %884 = vmatpush1.bf16.msra.mxu0 0
    %885 = vmatprep.subr.bf16.mxu0 0
    %886 = vmatpush1.bf16.msra.mxu0 0
    %887 = vmatprep.subr.bf16.mxu0 0
    %888 = vmatpush1.bf16.msra.mxu0 0
    %889 = vmatprep.subr.bf16.mxu0 0
    %890 = vmatpush1.bf16.msra.mxu0 0
    %891 = vmatprep.subr.bf16.mxu0 0
    %892 = vmatpush1.bf16.msra.mxu0 0
    %893 = vmatprep.subr.bf16.mxu0 0
    %894 = vmatpush1.bf16.msra.mxu0 0
    %895 = vmatprep.subr.bf16.mxu0 0
    %896 = vmatpush1.bf16.msra.mxu0 0
    %897 = vmatprep.subr.bf16.mxu0 0
    %898 = vmatpush1.bf16.msra.mxu0 0
    %899 = vmatprep.mubr.bf16.mxu0 0
    %900 = vmatmul.mubr.bf16.gmra.mrb[0].mxu0 %v742
    %v901 = vpop.f32.mrb[0].mxu0
    %v902 = vadd.f32 %v607, %v901
    %v903 = vpop.f32.mrb[0].mxu0
    %v904 = vadd.f32 %v611, %v903
    %v905 = vpop.f32.mrb[0].mxu0
    %v906 = vpop.f32.mrb[0].mxu0
    %907 = vdwg.mxu0
    %vm908 = vcmp.ge.f32.partialorder %v779, 0.0
    %vm909 = vcmp.ge.f32.partialorder %v781, 0.0
    %vm910 = vcmp.ge.f32.partialorder %v820, 0.0
    %vm911 = vcmp.ge.f32.partialorder %v822, 0.0
    %vm912 = vcmp.ge.f32.partialorder %v861, 0.0
    %vm913 = vcmp.ge.f32.partialorder %v863, 0.0
    %vm914 = vcmp.ge.f32.partialorder %v902, 0.0
    %vm915 = vcmp.ge.f32.partialorder %v904, 0.0
    %v916 = vmul.f32 %v779, 0.01
    %v917 = vmul.f32 %v781, 0.01
    %v918 = vmul.f32 %v820, 0.01
    %v919 = vmul.f32 %v822, 0.01
    %v920 = vmul.f32 %v861, 0.01
    %v921 = vmul.f32 %v863, 0.01
    %v922 = vmul.f32 %v902, 0.01
    %v923 = vmul.f32 %v904, 0.01
    %v924 = vsel %vm908, %v779, %v916
    %v925 = vsel %vm909, %v781, %v917
    %v926 = vsel %vm910, %v820, %v918
    %v927 = vsel %vm911, %v822, %v919
    %v928 = vsel %vm912, %v861, %v920
    %v929 = vsel %vm913, %v863, %v921
    %v930 = vsel %vm914, %v902, %v922
    %v931 = vsel %vm915, %v904, %v923
    %v940 = vcombine.low %v924, %v925
    %v941 = vcombine.low %v926, %v927
    %v942 = vcombine.low %v928, %v929
    %v943 = vcombine.low %v930, %v931
    %v945 = vunpack.c.l.s4 1966171168
    %v946 = vunpack.c.0.s8 %v945
    %v947 = vlaneseq
    %v948 = vshrl.u32 %v947, 7
    %v949 = vsub.s32 %v946, %v948
    %v950 = vrot.slane %v940, %v949
    %v952 = vunpack.c.l.s4 1966171168
    %v953 = vunpack.c.0.s8 %v952
    %v954 = vlaneseq
    %v955 = vshrl.u32 %v954, 7
    %v956 = vsub.s32 %v953, %v955
    %v957 = vrot.slane %v941, %v956
    %v959 = vunpack.c.l.s4 1966171168
    %v960 = vunpack.c.0.s8 %v959
    %v961 = vlaneseq
    %v962 = vshrl.u32 %v961, 7
    %v963 = vsub.s32 %v960, %v962
    %v964 = vrot.slane %v942, %v963
    %v966 = vunpack.c.l.s4 1966171168
    %v967 = vunpack.c.0.s8 %v966
    %v968 = vlaneseq
    %v969 = vshrl.u32 %v968, 7
    %v970 = vsub.s32 %v967, %v969
    %v971 = vrot.slane %v943, %v970
    %v972 = vcombine.low %v950, %v957
    %v973 = vcombine.low %v964, %v971
    %v975 = vunpack.c.l.s4 1966171168
    %v976 = vunpack.c.0.s8 %v975
    %v977 = vlaneseq
    %v978 = vshrl.u32 %v977, 7
    %v979 = vsub.s32 %v976, %v978
    %v980 = vrot.slane %v972, %v979
    %v982 = vunpack.c.l.s4 1966171168
    %v983 = vunpack.c.0.s8 %v982
    %v984 = vlaneseq
    %v985 = vshrl.u32 %v984, 7
    %v986 = vsub.s32 %v983, %v985
    %v987 = vrot.slane %v973, %v986
    %v988 = vcombine.low %v980, %v987
    %v991 = vunpack.c.l.s4 1966171168
    %v992 = vunpack.c.0.s8 %v991
    %v993 = vlaneseq
    %v994 = vshrl.u32 %v993, 7
    %v995 = vsub.s32 %v992, %v994
    %v996 = vrot.slane %v988, %v995
    %v998 = vcombine.low %v996, %v996
    %1000 = vst [vmem:[#allocation2 + $0x48] sm:$0xf0] %v998
    %1001 = vst [vmem:[#allocation2 + $0x50] sm:$0xf0] %v996
    %v1002 = vcombine.high %v950, %v957
    %v1003 = vcombine.high %v964, %v971
    %v1005 = vunpack.c.l.s4 1966171168
    %v1006 = vunpack.c.0.s8 %v1005
    %v1007 = vlaneseq
    %v1008 = vshrl.u32 %v1007, 7
    %v1009 = vsub.s32 %v1006, %v1008
    %v1010 = vrot.slane %v1002, %v1009
    %v1012 = vunpack.c.l.s4 1966171168
    %v1013 = vunpack.c.0.s8 %v1012
    %v1014 = vlaneseq
    %v1015 = vshrl.u32 %v1014, 7
    %v1016 = vsub.s32 %v1013, %v1015
    %v1017 = vrot.slane %v1003, %v1016
    %v1018 = vcombine.low %v1010, %v1017
    %v1021 = vunpack.c.l.s4 1966171168
    %v1022 = vunpack.c.0.s8 %v1021
    %v1023 = vlaneseq
    %v1024 = vshrl.u32 %v1023, 7
    %v1025 = vsub.s32 %v1022, %v1024
    %v1026 = vrot.slane %v1018, %v1025
    %v1028 = vcombine.low %v1026, %v1026
    %1030 = vst [vmem:[#allocation2 + $0x68] sm:$0xf0] %v1028
    %1031 = vst [vmem:[#allocation2 + $0x70] sm:$0xf0] %v1026
    %v1032 = vld [vmem:[#allocation2] sm:$0xff]
    %v1033 = vld [vmem:[#allocation2 + $0x8] sm:$0xff]
    %v1034 = vld [vmem:[#allocation2 + $0x10] sm:$0xff]
    %v1035 = vld [vmem:[#allocation2 + $0x40] sm:$0xff]
    %v1036 = vld [vmem:[#allocation2 + $0x48] sm:$0xff]
    %v1037 = vld [vmem:[#allocation2 + $0x50] sm:$0xff]
    %1044 = vrot.lane.b32.xlu0 %v1032, 16
    %v1045 = vpop.permute.xlu0 %1044
    %1046 = vrot.lane.b32.xlu0 %v1033, 16
    %v1047 = vpop.permute.xlu0 %1046
    %1048 = vrot.lane.b32.xlu0 %v1034, 16
    %v1049 = vpop.permute.xlu0 %1048
    %1050 = vrot.lane.b32.xlu0 %v1035, 16
    %v1051 = vpop.permute.xlu0 %1050
    %1052 = vrot.lane.b32.xlu0 %v1036, 16
    %v1053 = vpop.permute.xlu0 %1052
    %1054 = vrot.lane.b32.xlu0 %v1037, 16
    %v1055 = vpop.permute.xlu0 %1054
    %v1056 = vsel %vm168, %v1045, %v1047
    %v1057 = vsel %vm168, %v1047, %v1049
    %v1058 = vsel %vm168, %v1051, %v1053
    %v1059 = vsel %vm168, %v1053, %v1055
    %1064 = vrot.lane.b32.xlu0 %v1056, 1
    %v1065 = vpop.permute.xlu0 %1064
    %1066 = vrot.lane.b32.xlu0 %v1058, 1
    %v1067 = vpop.permute.xlu0 %1066
    %1068 = vrot.lane.b32.xlu0 %v1057, 1
    %v1069 = vpop.permute.xlu0 %1068
    %1070 = vrot.lane.b32.xlu0 %v1059, 1
    %v1071 = vpop.permute.xlu0 %1070
    %v1072 = vsel %vm177, %v1065, %v1069
    %v1073 = vsel %vm177, %v1067, %v1071
    %v1074 = vsel %vm177, %v1069, %v1065
    %v1075 = vsel %vm177, %v1071, %v1067
    %v1076 = vmul.f32 %v1074, %v142
    %v1077 = vmul.f32 %v1072, %v143
    %v1078 = vmul.f32 %v1075, %v142
    %v1079 = vmul.f32 %v1073, %v143
    %1080 = vst [vmem:[#allocation4] sm:$0xff] %v1076
    %1081 = vst [vmem:[#allocation4 + $0x8] sm:$0xff] %v1077
    %1082 = vst [vmem:[#allocation4 + $0x20] sm:$0xff] %v1078
    %1083 = vst [vmem:[#allocation4 + $0x28] sm:$0xff] %v1079
    %1084 = vst [vmem:[#allocation4 + $0x40] sm:$0xff] %v1056
    %1085 = vst [vmem:[#allocation4 + $0x48] sm:$0xff] %v1057
    %1086 = vst [vmem:[#allocation4 + $0x60] sm:$0xff] %v1058
    %1087 = vst [vmem:[#allocation4 + $0x68] sm:$0xff] %v1059
    %1088 = vrot.lane.b32.xlu0 %v1056, 127
    %v1089 = vpop.permute.xlu0 %1088
    %1090 = vrot.lane.b32.xlu0 %v1058, 127
    %v1091 = vpop.permute.xlu0 %1090
    %1092 = vrot.lane.b32.xlu0 %v1057, 127
    %v1093 = vpop.permute.xlu0 %1092
    %1094 = vrot.lane.b32.xlu0 %v1059, 127
    %v1095 = vpop.permute.xlu0 %1094
    %v1096 = vsel %vm190, %v1089, %v1093
    %v1097 = vsel %vm190, %v1091, %v1095
    %v1098 = vsel %vm190, %v1093, %v1089
    %v1099 = vsel %vm190, %v1095, %v1091
    %v1100 = vmul.f32 %v1096, %v154
    %v1101 = vmul.f32 %v1098, %v155
    %v1102 = vmul.f32 %v1097, %v154
    %v1103 = vmul.f32 %v1099, %v155
    %1104 = vst [vmem:[#allocation4 + $0x80] sm:$0xff] %v1100
    %1105 = vst [vmem:[#allocation4 + $0x88] sm:$0xff] %v1101
    %1106 = vst [vmem:[#allocation4 + $0xa0] sm:$0xff] %v1102
    %1107 = vst [vmem:[#allocation4 + $0xa8] sm:$0xff] %v1103
    %v1108 = vld [vmem:[#allocation2 + $0x20] sm:$0xff]
    %v1109 = vld [vmem:[#allocation2 + $0x28] sm:$0xff]
    %v1110 = vld [vmem:[#allocation2 + $0x30] sm:$0xff]
    %v1111 = vld [vmem:[#allocation2 + $0x60] sm:$0xff]
    %v1112 = vld [vmem:[#allocation2 + $0x68] sm:$0xff]
    %v1113 = vld [vmem:[#allocation2 + $0x70] sm:$0xff]
    %1120 = vrot.lane.b32.xlu0 %v1108, 16
    %v1121 = vpop.permute.xlu0 %1120
    %1122 = vrot.lane.b32.xlu0 %v1109, 16
    %v1123 = vpop.permute.xlu0 %1122
    %1124 = vrot.lane.b32.xlu0 %v1110, 16
    %v1125 = vpop.permute.xlu0 %1124
    %1126 = vrot.lane.b32.xlu0 %v1111, 16
    %v1127 = vpop.permute.xlu0 %1126
    %1128 = vrot.lane.b32.xlu0 %v1112, 16
    %v1129 = vpop.permute.xlu0 %1128
    %1130 = vrot.lane.b32.xlu0 %v1113, 16
    %v1131 = vpop.permute.xlu0 %1130
    %v1132 = vsel %vm168, %v1121, %v1123
    %v1133 = vsel %vm168, %v1123, %v1125
    %v1134 = vsel %vm168, %v1127, %v1129
    %v1135 = vsel %vm168, %v1129, %v1131
    %1140 = vrot.lane.b32.xlu0 %v1132, 1
    %v1141 = vpop.permute.xlu0 %1140
    %1142 = vrot.lane.b32.xlu0 %v1134, 1
    %v1143 = vpop.permute.xlu0 %1142
    %1144 = vrot.lane.b32.xlu0 %v1133, 1
    %v1145 = vpop.permute.xlu0 %1144
    %1146 = vrot.lane.b32.xlu0 %v1135, 1
    %v1147 = vpop.permute.xlu0 %1146
    %v1148 = vsel %vm177, %v1141, %v1145
    %v1149 = vsel %vm177, %v1143, %v1147
    %v1150 = vsel %vm177, %v1145, %v1141
    %v1151 = vsel %vm177, %v1147, %v1143
    %v1152 = vmul.f32 %v1150, %v142
    %v1153 = vmul.f32 %v1148, %v143
    %v1154 = vmul.f32 %v1151, %v142
    %v1155 = vmul.f32 %v1149, %v143
    %1156 = vst [vmem:[#allocation4 + $0x10] sm:$0xff] %v1152
    %1157 = vst [vmem:[#allocation4 + $0x18] sm:$0xff] %v1153
    %1158 = vst [vmem:[#allocation4 + $0x30] sm:$0xff] %v1154
    %1159 = vst [vmem:[#allocation4 + $0x38] sm:$0xff] %v1155
    %1160 = vst [vmem:[#allocation4 + $0x50] sm:$0xff] %v1132
    %1161 = vst [vmem:[#allocation4 + $0x58] sm:$0xff] %v1133
    %1162 = vst [vmem:[#allocation4 + $0x70] sm:$0xff] %v1134
    %1163 = vst [vmem:[#allocation4 + $0x78] sm:$0xff] %v1135
    %1164 = vrot.lane.b32.xlu0 %v1132, 127
    %v1165 = vpop.permute.xlu0 %1164
    %1166 = vrot.lane.b32.xlu0 %v1134, 127
    %v1167 = vpop.permute.xlu0 %1166
    %1168 = vrot.lane.b32.xlu0 %v1133, 127
    %v1169 = vpop.permute.xlu0 %1168
    %1170 = vrot.lane.b32.xlu0 %v1135, 127
    %v1171 = vpop.permute.xlu0 %1170
    %v1172 = vsel %vm190, %v1165, %v1169
    %v1173 = vsel %vm190, %v1167, %v1171
    %v1174 = vsel %vm190, %v1169, %v1165
    %v1175 = vsel %vm190, %v1171, %v1167
    %v1176 = vmul.f32 %v1172, %v154
    %v1177 = vmul.f32 %v1174, %v155
    %v1178 = vmul.f32 %v1173, %v154
    %v1179 = vmul.f32 %v1175, %v155
    %1180 = vst [vmem:[#allocation4 + $0x90] sm:$0xff] %v1176
    %1181 = vst [vmem:[#allocation4 + $0x98] sm:$0xff] %v1177
    %1182 = vst [vmem:[#allocation4 + $0xb0] sm:$0xff] %v1178
    %1183 = vst [vmem:[#allocation4 + $0xb8] sm:$0xff] %v1179
    %v1184 = vld [vmem:[#allocation2 + $0x8] sm:$0xff]
    %v1185 = vld [vmem:[#allocation2 + $0x10] sm:$0xff]
    %v1186 = vld [vmem:[#allocation2 + $0x48] sm:$0xff]
    %v1187 = vld [vmem:[#allocation2 + $0x50] sm:$0xff]
    %1188 = vrot.lane.b32.xlu0 %v1184, 1
    %v1189 = vpop.permute.xlu0 %1188
    %1190 = vrot.lane.b32.xlu0 %v1186, 1
    %v1191 = vpop.permute.xlu0 %1190
    %1192 = vrot.lane.b32.xlu0 %v1185, 1
    %v1193 = vpop.permute.xlu0 %1192
    %1194 = vrot.lane.b32.xlu0 %v1187, 1
    %v1195 = vpop.permute.xlu0 %1194
    %v1196 = vsel %vm177, %v1189, %v1193
    %v1197 = vsel %vm177, %v1191, %v1195
    %v1198 = vsel %vm177, %v1193, %v1189
    %v1199 = vsel %vm177, %v1195, %v1191
    %v1200 = vmul.f32 %v1198, %v142
    %v1201 = vmul.f32 %v1196, %v143
    %v1202 = vmul.f32 %v1199, %v142
    %v1203 = vmul.f32 %v1197, %v143
    %1204 = vst [vmem:[#allocation4 + $0xc0] sm:$0xff] %v1200
    %1205 = vst [vmem:[#allocation4 + $0xc8] sm:$0xff] %v1201
    %1206 = vst [vmem:[#allocation4 + $0xe0] sm:$0xff] %v1202
    %1207 = vst [vmem:[#allocation4 + $0xe8] sm:$0xff] %v1203
    %1208 = vst [vmem:[#allocation4 + $0x100] sm:$0xff] %v1184
    %1209 = vst [vmem:[#allocation4 + $0x108] sm:$0xff] %v1185
    %1210 = vst [vmem:[#allocation4 + $0x120] sm:$0xff] %v1186
    %1211 = vst [vmem:[#allocation4 + $0x128] sm:$0xff] %v1187
    %1212 = vrot.lane.b32.xlu0 %v1184, 127
    %v1213 = vpop.permute.xlu0 %1212
    %1214 = vrot.lane.b32.xlu0 %v1186, 127
    %v1215 = vpop.permute.xlu0 %1214
    %1216 = vrot.lane.b32.xlu0 %v1185, 127
    %v1217 = vpop.permute.xlu0 %1216
    %1218 = vrot.lane.b32.xlu0 %v1187, 127
    %v1219 = vpop.permute.xlu0 %1218
    %v1220 = vsel %vm190, %v1213, %v1217
    %v1221 = vsel %vm190, %v1215, %v1219
    %v1222 = vsel %vm190, %v1217, %v1213
    %v1223 = vsel %vm190, %v1219, %v1215
    %v1224 = vmul.f32 %v1220, %v154
    %v1225 = vmul.f32 %v1222, %v155
    %v1226 = vmul.f32 %v1221, %v154
    %v1227 = vmul.f32 %v1223, %v155
    %1228 = vst [vmem:[#allocation4 + $0x140] sm:$0xff] %v1224
    %1229 = vst [vmem:[#allocation4 + $0x148] sm:$0xff] %v1225
    %1230 = vst [vmem:[#allocation4 + $0x160] sm:$0xff] %v1226
    %1231 = vst [vmem:[#allocation4 + $0x168] sm:$0xff] %v1227
    %v1232 = vld [vmem:[#allocation2 + $0x28] sm:$0xff]
    %v1233 = vld [vmem:[#allocation2 + $0x30] sm:$0xff]
    %v1234 = vld [vmem:[#allocation2 + $0x68] sm:$0xff]
    %v1235 = vld [vmem:[#allocation2 + $0x70] sm:$0xff]
    %1236 = vrot.lane.b32.xlu0 %v1232, 1
    %v1237 = vpop.permute.xlu0 %1236
    %1238 = vrot.lane.b32.xlu0 %v1234, 1
    %v1239 = vpop.permute.xlu0 %1238
    %1240 = vrot.lane.b32.xlu0 %v1233, 1
    %v1241 = vpop.permute.xlu0 %1240
    %1242 = vrot.lane.b32.xlu0 %v1235, 1
    %v1243 = vpop.permute.xlu0 %1242
    %v1244 = vsel %vm177, %v1237, %v1241
    %v1245 = vsel %vm177, %v1239, %v1243
    %v1246 = vsel %vm177, %v1241, %v1237
    %v1247 = vsel %vm177, %v1243, %v1239
    %v1248 = vmul.f32 %v1246, %v142
    %v1249 = vmul.f32 %v1244, %v143
    %v1250 = vmul.f32 %v1247, %v142
    %v1251 = vmul.f32 %v1245, %v143
    %1252 = vst [vmem:[#allocation4 + $0xd0] sm:$0xff] %v1248
    %1253 = vst [vmem:[#allocation4 + $0xd8] sm:$0xff] %v1249
    %1254 = vst [vmem:[#allocation4 + $0xf0] sm:$0xff] %v1250
    %1255 = vst [vmem:[#allocation4 + $0xf8] sm:$0xff] %v1251
    %1256 = vst [vmem:[#allocation4 + $0x110] sm:$0xff] %v1232
    %1257 = vst [vmem:[#allocation4 + $0x118] sm:$0xff] %v1233
    %1258 = vst [vmem:[#allocation4 + $0x130] sm:$0xff] %v1234
    %1259 = vst [vmem:[#allocation4 + $0x138] sm:$0xff] %v1235
    %1260 = vrot.lane.b32.xlu0 %v1232, 127
    %v1261 = vpop.permute.xlu0 %1260
    %1262 = vrot.lane.b32.xlu0 %v1234, 127
    %v1263 = vpop.permute.xlu0 %1262
    %1264 = vrot.lane.b32.xlu0 %v1233, 127
    %v1265 = vpop.permute.xlu0 %1264
    %1266 = vrot.lane.b32.xlu0 %v1235, 127
    %v1267 = vpop.permute.xlu0 %1266
    %v1268 = vsel %vm190, %v1261, %v1265
    %v1269 = vsel %vm190, %v1263, %v1267
    %v1270 = vsel %vm190, %v1265, %v1261
    %v1271 = vsel %vm190, %v1267, %v1263
    %v1272 = vmul.f32 %v1268, %v154
    %v1273 = vmul.f32 %v1270, %v155
    %v1274 = vmul.f32 %v1269, %v154
    %v1275 = vmul.f32 %v1271, %v155
    %1276 = vst [vmem:[#allocation4 + $0x150] sm:$0xff] %v1272
    %1277 = vst [vmem:[#allocation4 + $0x158] sm:$0xff] %v1273
    %1278 = vst [vmem:[#allocation4 + $0x170] sm:$0xff] %v1274
    %1279 = vst [vmem:[#allocation4 + $0x178] sm:$0xff] %v1275
    %v1280 = vld [vmem:[#allocation2 + $0x8] sm:$0xff]
    %v1281 = vld [vmem:[#allocation2 + $0x10] sm:$0xff]
    %v1282 = vld [vmem:[#allocation2 + $0x18] sm:$0xff]
    %v1283 = vld [vmem:[#allocation2 + $0x48] sm:$0xff]
    %v1284 = vld [vmem:[#allocation2 + $0x50] sm:$0xff]
    %v1285 = vld [vmem:[#allocation2 + $0x58] sm:$0xff]
    %1292 = vrot.lane.b32.xlu0 %v1280, 112
    %v1293 = vpop.permute.xlu0 %1292
    %1294 = vrot.lane.b32.xlu0 %v1281, 112
    %v1295 = vpop.permute.xlu0 %1294
    %1296 = vrot.lane.b32.xlu0 %v1282, 112
    %v1297 = vpop.permute.xlu0 %1296
    %1298 = vrot.lane.b32.xlu0 %v1283, 112
    %v1299 = vpop.permute.xlu0 %1298
    %1300 = vrot.lane.b32.xlu0 %v1284, 112
    %v1301 = vpop.permute.xlu0 %1300
    %1302 = vrot.lane.b32.xlu0 %v1285, 112
    %v1303 = vpop.permute.xlu0 %1302
    %v1304 = vsel %vm295, %v1293, %v1295
    %v1305 = vsel %vm295, %v1295, %v1297
    %v1306 = vsel %vm295, %v1299, %v1301
    %v1307 = vsel %vm295, %v1301, %v1303
    %1312 = vrot.lane.b32.xlu0 %v1304, 1
    %v1313 = vpop.permute.xlu0 %1312
    %1314 = vrot.lane.b32.xlu0 %v1306, 1
    %v1315 = vpop.permute.xlu0 %1314
    %1316 = vrot.lane.b32.xlu0 %v1305, 1
    %v1317 = vpop.permute.xlu0 %1316
    %1318 = vrot.lane.b32.xlu0 %v1307, 1
    %v1319 = vpop.permute.xlu0 %1318
    %v1320 = vsel %vm177, %v1313, %v1317
    %v1321 = vsel %vm177, %v1315, %v1319
    %v1322 = vsel %vm177, %v1317, %v1313
    %v1323 = vsel %vm177, %v1319, %v1315
    %v1324 = vmul.f32 %v1322, %v142
    %v1325 = vmul.f32 %v1320, %v143
    %v1326 = vmul.f32 %v1323, %v142
    %v1327 = vmul.f32 %v1321, %v143
    %1328 = vst [vmem:[#allocation4 + $0x180] sm:$0xff] %v1324
    %1329 = vst [vmem:[#allocation4 + $0x188] sm:$0xff] %v1325
    %1330 = vst [vmem:[#allocation4 + $0x1a0] sm:$0xff] %v1326
    %1331 = vst [vmem:[#allocation4 + $0x1a8] sm:$0xff] %v1327
    %1332 = vst [vmem:[#allocation4 + $0x1c0] sm:$0xff] %v1304
    %1333 = vst [vmem:[#allocation4 + $0x1c8] sm:$0xff] %v1305
    %1334 = vst [vmem:[#allocation4 + $0x1e0] sm:$0xff] %v1306
    %1335 = vst [vmem:[#allocation4 + $0x1e8] sm:$0xff] %v1307
    %1336 = vrot.lane.b32.xlu0 %v1304, 127
    %v1337 = vpop.permute.xlu0 %1336
    %1338 = vrot.lane.b32.xlu0 %v1306, 127
    %v1339 = vpop.permute.xlu0 %1338
    %1340 = vrot.lane.b32.xlu0 %v1305, 127
    %v1341 = vpop.permute.xlu0 %1340
    %1342 = vrot.lane.b32.xlu0 %v1307, 127
    %v1343 = vpop.permute.xlu0 %1342
    %v1344 = vsel %vm190, %v1337, %v1341
    %v1345 = vsel %vm190, %v1339, %v1343
    %v1346 = vsel %vm190, %v1341, %v1337
    %v1347 = vsel %vm190, %v1343, %v1339
    %v1348 = vmul.f32 %v1344, %v154
    %v1349 = vmul.f32 %v1346, %v155
    %v1350 = vmul.f32 %v1345, %v154
    %v1351 = vmul.f32 %v1347, %v155
    %1352 = vst [vmem:[#allocation4 + $0x200] sm:$0xff] %v1348
    %1353 = vst [vmem:[#allocation4 + $0x208] sm:$0xff] %v1349
    %1354 = vst [vmem:[#allocation4 + $0x220] sm:$0xff] %v1350
    %1355 = vst [vmem:[#allocation4 + $0x228] sm:$0xff] %v1351
    %v1356 = vld [vmem:[#allocation2 + $0x28] sm:$0xff]
    %v1357 = vld [vmem:[#allocation2 + $0x30] sm:$0xff]
    %v1358 = vld [vmem:[#allocation2 + $0x38] sm:$0xff]
    %v1359 = vld [vmem:[#allocation2 + $0x68] sm:$0xff]
    %v1360 = vld [vmem:[#allocation2 + $0x70] sm:$0xff]
    %v1361 = vld [vmem:[#allocation2 + $0x78] sm:$0xff]
    %1368 = vrot.lane.b32.xlu0 %v1356, 112
    %v1369 = vpop.permute.xlu0 %1368
    %1370 = vrot.lane.b32.xlu0 %v1357, 112
    %v1371 = vpop.permute.xlu0 %1370
    %1372 = vrot.lane.b32.xlu0 %v1358, 112
    %v1373 = vpop.permute.xlu0 %1372
    %1374 = vrot.lane.b32.xlu0 %v1359, 112
    %v1375 = vpop.permute.xlu0 %1374
    %1376 = vrot.lane.b32.xlu0 %v1360, 112
    %v1377 = vpop.permute.xlu0 %1376
    %1378 = vrot.lane.b32.xlu0 %v1361, 112
    %v1379 = vpop.permute.xlu0 %1378
    %v1380 = vsel %vm295, %v1369, %v1371
    %v1381 = vsel %vm295, %v1371, %v1373
    %v1382 = vsel %vm295, %v1375, %v1377
    %v1383 = vsel %vm295, %v1377, %v1379
    %1388 = vrot.lane.b32.xlu0 %v1380, 1
    %v1389 = vpop.permute.xlu0 %1388
    %1390 = vrot.lane.b32.xlu0 %v1382, 1
    %v1391 = vpop.permute.xlu0 %1390
    %1392 = vrot.lane.b32.xlu0 %v1381, 1
    %v1393 = vpop.permute.xlu0 %1392
    %1394 = vrot.lane.b32.xlu0 %v1383, 1
    %v1395 = vpop.permute.xlu0 %1394
    %v1396 = vsel %vm177, %v1389, %v1393
    %v1397 = vsel %vm177, %v1391, %v1395
    %v1398 = vsel %vm177, %v1393, %v1389
    %v1399 = vsel %vm177, %v1395, %v1391
    %v1400 = vmul.f32 %v1398, %v142
    %v1401 = vmul.f32 %v1396, %v143
    %v1402 = vmul.f32 %v1399, %v142
    %v1403 = vmul.f32 %v1397, %v143
    %1404 = vst [vmem:[#allocation4 + $0x190] sm:$0xff] %v1400
    %1405 = vst [vmem:[#allocation4 + $0x198] sm:$0xff] %v1401
    %1406 = vst [vmem:[#allocation4 + $0x1b0] sm:$0xff] %v1402
    %1407 = vst [vmem:[#allocation4 + $0x1b8] sm:$0xff] %v1403
    %1408 = vst [vmem:[#allocation4 + $0x1d0] sm:$0xff] %v1380
    %1409 = vst [vmem:[#allocation4 + $0x1d8] sm:$0xff] %v1381
    %1410 = vst [vmem:[#allocation4 + $0x1f0] sm:$0xff] %v1382
    %1411 = vst [vmem:[#allocation4 + $0x1f8] sm:$0xff] %v1383
    %1412 = vrot.lane.b32.xlu0 %v1380, 127
    %v1413 = vpop.permute.xlu0 %1412
    %1414 = vrot.lane.b32.xlu0 %v1382, 127
    %v1415 = vpop.permute.xlu0 %1414
    %1416 = vrot.lane.b32.xlu0 %v1381, 127
    %v1417 = vpop.permute.xlu0 %1416
    %1418 = vrot.lane.b32.xlu0 %v1383, 127
    %v1419 = vpop.permute.xlu0 %1418
    %v1420 = vsel %vm190, %v1413, %v1417
    %v1421 = vsel %vm190, %v1415, %v1419
    %v1422 = vsel %vm190, %v1417, %v1413
    %v1423 = vsel %vm190, %v1419, %v1415
    %v1424 = vmul.f32 %v1420, %v154
    %v1425 = vmul.f32 %v1422, %v155
    %v1426 = vmul.f32 %v1421, %v154
    %v1427 = vmul.f32 %v1423, %v155
    %1428 = vst [vmem:[#allocation4 + $0x210] sm:$0xff] %v1424
    %1429 = vst [vmem:[#allocation4 + $0x218] sm:$0xff] %v1425
    %1430 = vst [vmem:[#allocation4 + $0x230] sm:$0xff] %v1426
    %1431 = vst [vmem:[#allocation4 + $0x238] sm:$0xff] %v1427
    %v1432 = vld [vmem:[%s7] sm:$0xff]
    %v1433 = vld [vmem:[#allocation4] sm:$0xff]
    %v1434 = vld [vmem:[#allocation4 + $0x8] sm:$0xff]
    %v1435 = vld [vmem:[#allocation4 + $0x10] sm:$0xff]
    %v1436 = vld [vmem:[#allocation4 + $0x18] sm:$0xff]
    %v1437 = vld [vmem:[#allocation4 + $0x20] sm:$0xff]
    %v1438 = vld [vmem:[#allocation4 + $0x28] sm:$0xff]
    %v1439 = vld [vmem:[#allocation4 + $0x30] sm:$0xff]
    %v1440 = vld [vmem:[#allocation4 + $0x38] sm:$0xff]
    %v1441 = vld [vmem:[#allocation4 + $0x40] sm:$0xff]
    %v1442 = vld [vmem:[#allocation4 + $0x48] sm:$0xff]
    %v1443 = vld [vmem:[#allocation4 + $0x50] sm:$0xff]
    %v1444 = vld [vmem:[#allocation4 + $0x58] sm:$0xff]
    %v1445 = vld [vmem:[#allocation4 + $0x60] sm:$0xff]
    %v1446 = vld [vmem:[#allocation4 + $0x68] sm:$0xff]
    %v1447 = vld [vmem:[#allocation4 + $0x70] sm:$0xff]
    %v1448 = vld [vmem:[#allocation4 + $0x78] sm:$0xff]
    %v1449 = vld [vmem:[#allocation4 + $0x80] sm:$0xff]
    %v1450 = vld [vmem:[#allocation4 + $0x88] sm:$0xff]
    %v1451 = vld [vmem:[#allocation4 + $0x90] sm:$0xff]
    %v1452 = vld [vmem:[#allocation4 + $0x98] sm:$0xff]
    %v1453 = vld [vmem:[#allocation4 + $0xa0] sm:$0xff]
    %v1454 = vld [vmem:[#allocation4 + $0xa8] sm:$0xff]
    %v1455 = vld [vmem:[#allocation4 + $0xb0] sm:$0xff]
    %v1456 = vld [vmem:[#allocation4 + $0xb8] sm:$0xff]
    %v1457 = vld [vmem:[#allocation4 + $0xc0] sm:$0xff]
    %v1458 = vld [vmem:[#allocation4 + $0xc8] sm:$0xff]
    %v1459 = vld [vmem:[#allocation4 + $0xd0] sm:$0xff]
    %v1460 = vld [vmem:[#allocation4 + $0xd8] sm:$0xff]
    %v1461 = vld [vmem:[#allocation4 + $0xe0] sm:$0xff]
    %v1462 = vld [vmem:[#allocation4 + $0xe8] sm:$0xff]
    %v1463 = vld [vmem:[#allocation4 + $0xf0] sm:$0xff]
    %v1464 = vld [vmem:[#allocation4 + $0xf8] sm:$0xff]
    %v1465 = vld [vmem:[#allocation4 + $0x100] sm:$0xff]
    %v1466 = vld [vmem:[#allocation4 + $0x108] sm:$0xff]
    %v1467 = vld [vmem:[#allocation4 + $0x110] sm:$0xff]
    %v1468 = vld [vmem:[#allocation4 + $0x118] sm:$0xff]
    %v1469 = vld [vmem:[#allocation4 + $0x120] sm:$0xff]
    %v1470 = vld [vmem:[#allocation4 + $0x128] sm:$0xff]
    %v1471 = vld [vmem:[#allocation4 + $0x130] sm:$0xff]
    %v1472 = vld [vmem:[#allocation4 + $0x138] sm:$0xff]
    %v1473 = vld [vmem:[#allocation4 + $0x140] sm:$0xff]
    %v1474 = vld [vmem:[#allocation4 + $0x148] sm:$0xff]
    %v1475 = vld [vmem:[#allocation4 + $0x150] sm:$0xff]
    %v1476 = vld [vmem:[#allocation4 + $0x158] sm:$0xff]
    %v1477 = vld [vmem:[#allocation4 + $0x160] sm:$0xff]
    %v1478 = vld [vmem:[#allocation4 + $0x168] sm:$0xff]
    %v1479 = vld [vmem:[#allocation4 + $0x170] sm:$0xff]
    %v1480 = vld [vmem:[#allocation4 + $0x178] sm:$0xff]
    %v1481 = vld [vmem:[#allocation4 + $0x180] sm:$0xff]
    %v1482 = vld [vmem:[#allocation4 + $0x188] sm:$0xff]
    %v1483 = vld [vmem:[#allocation4 + $0x190] sm:$0xff]
    %v1484 = vld [vmem:[#allocation4 + $0x198] sm:$0xff]
    %v1485 = vld [vmem:[#allocation4 + $0x1a0] sm:$0xff]
    %v1486 = vld [vmem:[#allocation4 + $0x1a8] sm:$0xff]
    %v1487 = vld [vmem:[#allocation4 + $0x1b0] sm:$0xff]
    %v1488 = vld [vmem:[#allocation4 + $0x1b8] sm:$0xff]
    %v1489 = vld [vmem:[#allocation4 + $0x1c0] sm:$0xff]
    %v1490 = vld [vmem:[#allocation4 + $0x1c8] sm:$0xff]
    %v1491 = vld [vmem:[#allocation4 + $0x1d0] sm:$0xff]
    %v1492 = vld [vmem:[#allocation4 + $0x1d8] sm:$0xff]
    %v1493 = vld [vmem:[#allocation4 + $0x1e0] sm:$0xff]
    %v1494 = vld [vmem:[#allocation4 + $0x1e8] sm:$0xff]
    %v1495 = vld [vmem:[#allocation4 + $0x1f0] sm:$0xff]
    %v1496 = vld [vmem:[#allocation4 + $0x1f8] sm:$0xff]
    %v1497 = vld [vmem:[#allocation4 + $0x200] sm:$0xff]
    %v1498 = vld [vmem:[#allocation4 + $0x208] sm:$0xff]
    %v1499 = vld [vmem:[#allocation4 + $0x210] sm:$0xff]
    %v1500 = vld [vmem:[#allocation4 + $0x218] sm:$0xff]
    %v1501 = vld [vmem:[#allocation4 + $0x220] sm:$0xff]
    %v1502 = vld [vmem:[#allocation4 + $0x228] sm:$0xff]
    %v1503 = vld [vmem:[#allocation4 + $0x230] sm:$0xff]
    %v1504 = vld [vmem:[#allocation4 + $0x238] sm:$0xff]
    %v1505 = vld [vmem:[%s8] sm:$0xf]
    %1507 = vset.pattern.permute.xlu0 0
    %1508 = vperm.xlu0 %1507, %v1505
    %v1509 = vpop.permute.xlu0 %1508
    %v1512 = vcombine.high %v1432, %v1432
    %v1513 = vsel %vm168, %v1512, 0
    %1515 = vmatprep.subr.mxu0 %v1434
    %1516 = vmatpush1.msra.mxu0 %v1433
    %1517 = vmatprep.subr.mxu0 %v1438
    %1518 = vmatpush1.msra.mxu0 %v1437
    %1519 = vmatprep.subr.mxu0 %v1442
    %1520 = vmatpush1.msra.mxu0 %v1441
    %1521 = vmatprep.subr.mxu0 %v1446
    %1522 = vmatpush1.msra.mxu0 %v1445
    %1523 = vmatprep.subr.mxu0 %v1450
    %1524 = vmatpush1.msra.mxu0 %v1449
    %1525 = vmatprep.subr.mxu0 %v1454
    %1526 = vmatpush1.msra.mxu0 %v1453
    %1527 = vmatprep.subr.mxu0 %v1458
    %1528 = vmatpush1.msra.mxu0 %v1457
    %1529 = vmatprep.subr.mxu0 %v1462
    %1530 = vmatpush1.msra.mxu0 %v1461
    %1531 = vmatprep.subr.mxu0 %v1466
    %1532 = vmatpush1.msra.mxu0 %v1465
    %1533 = vmatprep.subr.mxu0 %v1470
    %1534 = vmatpush1.msra.mxu0 %v1469
    %1535 = vmatprep.subr.mxu0 %v1474
    %1536 = vmatpush1.msra.mxu0 %v1473
    %1537 = vmatprep.subr.mxu0 %v1478
    %1538 = vmatpush1.msra.mxu0 %v1477
    %1539 = vmatprep.subr.mxu0 %v1482
    %1540 = vmatpush1.msra.mxu0 %v1481
    %1541 = vmatprep.subr.mxu0 %v1486
    %1542 = vmatpush1.msra.mxu0 %v1485
    %1543 = vmatprep.subr.mxu0 %v1490
    %1544 = vmatpush1.msra.mxu0 %v1489
    %1545 = vmatprep.subr.mxu0 %v1494
    %1546 = vmatpush1.msra.mxu0 %v1493
    %1547 = vmatprep.subr.mxu0 %v1498
    %1548 = vmatpush1.msra.mxu0 %v1497
    %1549 = vmatprep.subr.mxu0 %v1502
    %1550 = vmatpush1.msra.mxu0 %v1501
    %1551 = vmatprep.subr.mxu0 0.0
    %1552 = vmatpush1.msra.mxu0 0.0
    %1553 = vmatprep.subr.mxu0 0.0
    %1554 = vmatpush1.msra.mxu0 0.0
    %1555 = vmatprep.subr.mxu0 0.0
    %1556 = vmatpush1.msra.mxu0 0.0
    %1557 = vmatprep.subr.mxu0 0.0
    %1558 = vmatpush1.msra.mxu0 0.0
    %1559 = vmatprep.subr.mxu0 0.0
    %1560 = vmatpush1.msra.mxu0 0.0
    %1561 = vmatprep.subr.mxu0 0.0
    %1562 = vmatpush1.msra.mxu0 0.0
    %1563 = vmatprep.subr.mxu0 0.0
    %1564 = vmatpush1.msra.mxu0 0.0
    %1565 = vmatprep.subr.mxu0 0.0
    %1566 = vmatpush1.msra.mxu0 0.0
    %1567 = vmatprep.subr.mxu0 0.0
    %1568 = vmatpush1.msra.mxu0 0.0
    %1569 = vmatprep.subr.mxu0 0.0
    %1570 = vmatpush1.msra.mxu0 0.0
    %1571 = vmatprep.subr.mxu0 0.0
    %1572 = vmatpush1.msra.mxu0 0.0
    %1573 = vmatprep.subr.mxu0 0.0
    %1574 = vmatpush1.msra.mxu0 0.0
    %1575 = vmatprep.subr.mxu0 0.0
    %1576 = vmatpush1.msra.mxu0 0.0
    %1577 = vmatprep.subr.mxu0 0.0
    %1578 = vmatpush1.msra.mxu0 0.0
    %1579 = vmatprep.mubr.f32.mxu0 %v1513
    %1580 = vmatmul.mubr.f32.gmra.mrb[0].mxu0 %v1432
    %v1581 = vpop.f32.mrb[0].mxu0
    %v1582 = vadd.f32 %v1509, %v1581
    %v1583 = vpop.f32.mrb[0].mxu0
    %v1584 = vadd.f32 %v1509, %v1583
    %1585 = vdwg.mxu0
    %1586 = vmatprep.subr.mxu0 %v1436
    %1587 = vmatpush1.msra.mxu0 %v1435
    %1588 = vmatprep.subr.mxu0 %v1440
    %1589 = vmatpush1.msra.mxu0 %v1439
    %1590 = vmatprep.subr.mxu0 %v1444
    %1591 = vmatpush1.msra.mxu0 %v1443
    %1592 = vmatprep.subr.mxu0 %v1448
    %1593 = vmatpush1.msra.mxu0 %v1447
    %1594 = vmatprep.subr.mxu0 %v1452
    %1595 = vmatpush1.msra.mxu0 %v1451
    %1596 = vmatprep.subr.mxu0 %v1456
    %1597 = vmatpush1.msra.mxu0 %v1455
    %1598 = vmatprep.subr.mxu0 %v1460
    %1599 = vmatpush1.msra.mxu0 %v1459
    %1600 = vmatprep.subr.mxu0 %v1464
    %1601 = vmatpush1.msra.mxu0 %v1463
    %1602 = vmatprep.subr.mxu0 %v1468
    %1603 = vmatpush1.msra.mxu0 %v1467
    %1604 = vmatprep.subr.mxu0 %v1472
    %1605 = vmatpush1.msra.mxu0 %v1471
    %1606 = vmatprep.subr.mxu0 %v1476
    %1607 = vmatpush1.msra.mxu0 %v1475
    %1608 = vmatprep.subr.mxu0 %v1480
    %1609 = vmatpush1.msra.mxu0 %v1479
    %1610 = vmatprep.subr.mxu0 %v1484
    %1611 = vmatpush1.msra.mxu0 %v1483
    %1612 = vmatprep.subr.mxu0 %v1488
    %1613 = vmatpush1.msra.mxu0 %v1487
    %1614 = vmatprep.subr.mxu0 %v1492
    %1615 = vmatpush1.msra.mxu0 %v1491
    %1616 = vmatprep.subr.mxu0 %v1496
    %1617 = vmatpush1.msra.mxu0 %v1495
    %1618 = vmatprep.subr.mxu0 %v1500
    %1619 = vmatpush1.msra.mxu0 %v1499
    %1620 = vmatprep.subr.mxu0 %v1504
    %1621 = vmatpush1.msra.mxu0 %v1503
    %1622 = vmatprep.subr.mxu0 0.0
    %1623 = vmatpush1.msra.mxu0 0.0
    %1624 = vmatprep.subr.mxu0 0.0
    %1625 = vmatpush1.msra.mxu0 0.0
    %1626 = vmatprep.subr.mxu0 0.0
    %1627 = vmatpush1.msra.mxu0 0.0
    %1628 = vmatprep.subr.mxu0 0.0
    %1629 = vmatpush1.msra.mxu0 0.0
    %1630 = vmatprep.subr.mxu0 0.0
    %1631 = vmatpush1.msra.mxu0 0.0
    %1632 = vmatprep.subr.mxu0 0.0
    %1633 = vmatpush1.msra.mxu0 0.0
    %1634 = vmatprep.subr.mxu0 0.0
    %1635 = vmatpush1.msra.mxu0 0.0
    %1636 = vmatprep.subr.mxu0 0.0
    %1637 = vmatpush1.msra.mxu0 0.0
    %1638 = vmatprep.subr.mxu0 0.0
    %1639 = vmatpush1.msra.mxu0 0.0
    %1640 = vmatprep.subr.mxu0 0.0
    %1641 = vmatpush1.msra.mxu0 0.0
    %1642 = vmatprep.subr.mxu0 0.0
    %1643 = vmatpush1.msra.mxu0 0.0
    %1644 = vmatprep.subr.mxu0 0.0
    %1645 = vmatpush1.msra.mxu0 0.0
    %1646 = vmatprep.subr.mxu0 0.0
    %1647 = vmatpush1.msra.mxu0 0.0
    %1648 = vmatprep.subr.mxu0 0.0
    %1649 = vmatpush1.msra.mxu0 0.0
    %1650 = vmatprep.mubr.f32.mxu0 %v1513
    %1651 = vmatmul.mubr.f32.gmra.mrb[0].mxu0 %v1432
    %v1652 = vpop.f32.mrb[0].mxu0
    %v1653 = vadd.f32 %v1509, %v1652
    %v1654 = vpop.f32.mrb[0].mxu0
    %v1655 = vadd.f32 %v1509, %v1654
    %1656 = vdwg.mxu0
    %vm1657 = vcmp.ge.f32.partialorder %v1582, 0.0
    %vm1658 = vcmp.ge.f32.partialorder %v1584, 0.0
    %vm1659 = vcmp.ge.f32.partialorder %v1653, 0.0
    %vm1660 = vcmp.ge.f32.partialorder %v1655, 0.0
    %v1661 = vmul.f32 %v1582, 0.01
    %v1662 = vmul.f32 %v1584, 0.01
    %v1663 = vmul.f32 %v1653, 0.01
    %v1664 = vmul.f32 %v1655, 0.01
    %v1665 = vsel %vm1657, %v1582, %v1661
    %v1666 = vsel %vm1658, %v1584, %v1662
    %v1667 = vsel %vm1659, %v1653, %v1663
    %v1668 = vsel %vm1660, %v1655, %v1664
    %v1671 = vcombine.low %v1665, %v1666
    %1673 = vst [vmem:[#allocation14] sm:$0xff] %v1671
    %v1674 = vld [vmem:[%s2] sm:$0xff]
    %v1676 = vcombine.high %v1674, %v1674
    %v1678 = vmul.f32 %v1665, %v1674
    %v1679 = vmul.f32 %v1666, %v1676
    %vm1680 = vcmask 1043456
    %v1681 = vsel %vm1680, %v1678, 0.0
    %v1682 = vsel %vm1680, %v1679, 0.0
    %v1683 = vadd.f32 %v1681, %v1682
    %1684 = vadd.xlane.f32.xlu0 %v1683
    %v1685 = vpop.xlane.xlu0 %1684
    %v1686 = vrot.slane %v1685, 4
    %v1687 = vadd.f32 %v1685, %v1686
    %v1688 = vrot.slane %v1687, 2
    %v1689 = vadd.f32 %v1687, %v1688
    %v1690 = vrot.slane %v1689, 1
    %v1691 = vadd.f32 %v1689, %v1690
    %s1692 = vtos %v1691
    %s1693 = smul.f32 %s1692, 0.5
    %s1694 = scalar_lea.smem [#allocation15], 0
    %1695 = sst [smem:[%s1694]] %s1693
    %v1698 = vcombine.low %v1667, %v1668
    %s1700 = scalar_lea.vmem [#allocation14], 8
    %1701 = vst [vmem:[%s1700] sm:$0xff] %v1698
    %s1702 = scalar_lea.vmem %s2, 8
    %v1703 = vld [vmem:[%s1702] sm:$0xff]
    %v1705 = vcombine.high %v1703, %v1703
    %v1707 = vmul.f32 %v1667, %v1703
    %v1708 = vmul.f32 %v1668, %v1705
    %v1709 = vsel %vm1680, %v1707, 0.0
    %v1710 = vsel %vm1680, %v1708, 0.0
    %v1711 = vadd.f32 %v1709, %v1710
    %1712 = vadd.xlane.f32.xlu0 %v1711
    %v1713 = vpop.xlane.xlu0 %1712
    %v1714 = vrot.slane %v1713, 4
    %v1715 = vadd.f32 %v1713, %v1714
    %v1716 = vrot.slane %v1715, 2
    %v1717 = vadd.f32 %v1715, %v1716
    %v1718 = vrot.slane %v1717, 1
    %v1719 = vadd.f32 %v1717, %v1718
    %s1720 = vtos %v1719
    %s1721 = smul.f32 %s1720, 0.5
    %s1722 = scalar_lea.smem [#allocation15], 128
    %1723 = sst [smem:[%s1722]] %s1721
    // Predicated region
    $region54: #{tpu_custom_call.1} parent=1 // pred_check
      _
    $region55: #{tpu_custom_call.1} parent=1 // pred_check_branch
      %1725 = sbr.rel (0) target = $region57
    $region56: #{tpu_custom_call.1} parent=1 // pred_region
      %s1727 = ssub.s32 256, 256
      %1728 = vsyncadd [#allocation7], %s1727
      %s1729 = sshll.u32 [#allocation14], 4
      %s1730 = int_to_ptr.vmem [resolvable:$true] %s1729
      %1735 = dma.vmem_to_hbm [thread:$0]  %s1730, 256, %s9, [#allocation7], 128, 128, 8
    $region57: #{tpu_custom_call.1} parent=1 // pred_fallthru
      _
    // Predicated region
    $region58: #{tpu_custom_call.1} parent=1 // pred_check
      _
    $region59: #{tpu_custom_call.1} parent=1 // pred_check_branch
      %1737 = sbr.rel (0) target = $region61
    $region60: #{tpu_custom_call.1} parent=1 // pred_region
      %s1739 = ssub.s32 32, 32
      %1740 = vsyncadd [#allocation8], %s1739
      %s1742 = sshll.u32 %s10, 4
      %s1743 = int_to_ptr.vmem [resolvable:$true] %s1742
      %1745 = dma.smem_to_vmem [#allocation15], 32, %s1743, [#allocation8]
    $region61: #{tpu_custom_call.1} parent=1 // pred_fallthru
      _
    // Predicated region
    $region62: #{tpu_custom_call.1} parent=1 // pred_check
      _
    $region63: #{tpu_custom_call.1} parent=1 // pred_check_branch
      %1747 = sbr.rel (0) target = $region65
    $region64: #{tpu_custom_call.1} parent=1 // pred_region
      %1748 = dma.done [#allocation7], 256
    $region65: #{tpu_custom_call.1} parent=1 // pred_fallthru
      _
    // Predicated region
    $region66: #{tpu_custom_call.1} parent=1 // pred_check
      _
    $region67: #{tpu_custom_call.1} parent=1 // pred_check_branch
      %1750 = sbr.rel (0) target = $region69
    $region68: #{tpu_custom_call.1} parent=1 // pred_region
      %1751 = dma.done [#allocation8], 32
    $region69: #{tpu_custom_call.1} parent=1 // pred_fallthru
      _
    %1752 = sfence
    %1753 = vsyncpa [#allocation6], 1
    %1754 = vsyncpa [#allocation10], 1
    %1755 = vsyncpa [#allocation13], 1
    %1756 = vsyncpa [#allocation7], 1
    %1757 = vsyncpa [#allocation8], 1

</llo_original>
